<compile_context>
chip_gen: v5e
topology: v5e:2x2
jax: 0.10.0
libtpu: 0.0.40
codegen_flags: <defaults>
</compile_context>

<pallas_src>
import functools

import jax
import jax.numpy as jnp
from jax import lax
from jax.experimental import pallas as pl
from jax.experimental.pallas import tpu as pltpu

GAMMA = 0.5  # stands in for args.gamma (global `args` in the reference code)


# ----------------------------------------------------------------------------
# Tiling helpers
# ----------------------------------------------------------------------------

def _pick_tile(n, target, step):
  """Largest multiple of `step`, <= target, dividing n; else the full dim."""
  c = min(target, (n // step) * step)
  while c >= step:
    if n % c == 0:
      return c
    c -= step
  # TODO(synk): pad ragged row counts instead of falling back to a full block.
  return n


def _row_tile(n, target=512):
  return _pick_tile(n, target, 16)


def _gcn_row_tile(n, target=1024):
  # Prefer >=2 row tiles so v7x's two TensorCores both get work.
  if n >= 2 * 16:
    target = min(target, max(16, ((n // 2) // 16) * 16))
  return _pick_tile(n, target, 16)


def _gcn_k_tile(n, target=1024):
  return _pick_tile(n, target, 128)


def _cparams(semantics, vmem_mb=32):
  return pltpu.CompilerParams(
      dimension_semantics=semantics,
      vmem_limit_bytes=vmem_mb * 1024 * 1024)


# ----------------------------------------------------------------------------
# In-kernel math helpers (values, not refs)
# ----------------------------------------------------------------------------

def _dot(a, b):
  """bf16 x bf16 MXU matmul with f32 accumulation."""
  return jnp.dot(a.astype(jnp.bfloat16), b.astype(jnp.bfloat16),
                 preferred_element_type=jnp.float32)


def _two_sem(e1, e2, w1, b1, w2):
  """EmbeddingTwoSemantic: one stacked matmul for both inputs, 2-way softmax."""
  m = e1.shape[0]
  both = jnp.concatenate([e1, e2], axis=0)              # (2m, d)
  t = jnp.tanh(_dot(both, w1) + b1)
  q = jnp.sum(t * w2, axis=-1, keepdims=True)           # Linear(d,1,no bias)
  a1 = jax.nn.sigmoid(q[:m] - q[m:])                    # softmax([q1,q2])[0]
  return a1 * e1 + (1.0 - a1) * e2


def _mlp_ln(x, w, b, g, beta):
  """Linear(d,d) -> ReLU -> LayerNorm(eps=1e-6)."""
  y = jnp.maximum(_dot(x, w) + b, 0.0)
  mu = jnp.mean(y, axis=-1, keepdims=True)
  var = jnp.mean(jnp.square(y - mu), axis=-1, keepdims=True)
  return (y - mu) * lax.rsqrt(var + 1e-6) * g + beta


def _l2n(x):
  """F.normalize(p=2, dim=1), eps=1e-12."""
  return x * lax.rsqrt(jnp.maximum(jnp.sum(x * x, axis=-1, keepdims=True),
                                   1e-24))


# ----------------------------------------------------------------------------
# Kernel 1: IdFusionModel + content2item + item-ego normalize (row-tiled)
# ----------------------------------------------------------------------------

def _id_fusion_kernel(img_ref, txt_ref, iid_ref, tid_ref,
                      wi, bi, wt, bt,
                      iiw1, iib1, iiw2,
                      tiw1, tib1, tiw2,
                      fiw1, fib1, fiw2,
                      cw, cb, cg, cbeta,
                      slab_ref, ego_ref):
  image = _dot(img_ref[...], wi[...]) + bi[...]
  text = _dot(txt_ref[...], wt[...]) + bt[...]
  spec_img = _two_sem(image, iid_ref[...], iiw1[...], iib1[...], iiw2[...])
  spec_txt = _two_sem(text, tid_ref[...], tiw1[...], tib1[...], tiw2[...])
  fusion = _two_sem(spec_img, spec_txt, fiw1[...], fib1[...], fiw2[...])
  content = _mlp_ln(fusion, cw[...], cb[...], cg[...], cbeta[...])
  # one wide, lane-dense f32 slab: [image|text|spec_img|spec_txt|fusion|content]
  slab_ref[...] = jnp.concatenate(
      [image, text, spec_img, spec_txt, fusion, content], axis=-1)
  # L2-normalized item ego for the GCN, already in bf16 (GCN streaming dtype)
  ego_ref[...] = jnp.concatenate(
      [_l2n(image), _l2n(text)], axis=-1).astype(jnp.bfloat16)


def id_fusion(p, n_items, dim):
  tm = _row_tile(n_items)

  def row_spec(ncols):
    return pl.BlockSpec((tm, ncols), lambda i: (i, 0))

  def full_spec(shape):
    return pl.BlockSpec(shape, lambda i: (0,) * len(shape))

  ins = [p["image_feats"], p["text_feats"], p["item_iid"], p["item_tid"],
         p["W_image2item"], p["b_image2item"],
         p["W_text2item"], p["b_text2item"],
         *p["image_item"], *p["text_item"], *p["fusion_item"],
         *p["content2item"]]
  in_specs = ([row_spec(p["image_feats"].shape[1]),
               row_spec(p["text_feats"].shape[1]),
               row_spec(dim), row_spec(dim)]
              + [full_spec(x.shape) for x in ins[4:]])

  slab, ego_items = pl.pallas_call(
      _id_fusion_kernel,
      out_shape=(jax.ShapeDtypeStruct((n_items, 6 * dim), jnp.float32),
                 jax.ShapeDtypeStruct((n_items, 2 * dim), jnp.bfloat16)),
      grid=(n_items // tm,),
      in_specs=in_specs,
      out_specs=(row_spec(6 * dim), row_spec(2 * dim)),
      compiler_params=_cparams(("parallel",)),
  )(*ins)
  return slab, ego_items


# ----------------------------------------------------------------------------
# Kernel 2: user-preference ego normalize (per-channel L2), emits bf16
# ----------------------------------------------------------------------------

def _user_ego_kernel(pi_ref, pt_ref, ego_ref):
  ego_ref[...] = jnp.concatenate(
      [_l2n(pi_ref[...]), _l2n(pt_ref[...])], axis=-1).astype(jnp.bfloat16)


def user_ego(p, n_users, dim):
  tm = _row_tile(n_users)
  spec = pl.BlockSpec((tm, dim), lambda i: (i, 0))
  return pl.pallas_call(
      _user_ego_kernel,
      out_shape=jax.ShapeDtypeStruct((n_users, 2 * dim), jnp.bfloat16),
      grid=(n_users // tm,),
      in_specs=[spec, spec],
      out_specs=pl.BlockSpec((tm, 2 * dim), lambda i: (i, 0)),
      compiler_params=_cparams(("parallel",)),
  )(p["user_pref_image"], p["user_pref_text"])


# ----------------------------------------------------------------------------
# Kernel 3: fused-channel GCN layer
#   adj (bf16, tiled i,k) @ ego (bf16, VMEM-resident) + gamma*base, and the
#   running layer sum accumulated directly into the aliased acc output.
# ----------------------------------------------------------------------------

def _gcn_layer_kernel(adj_ref, ego_ref, base_ref, accin_ref,
                      newego_ref, accout_ref, *, gamma, tk):
  k = pl.program_id(1)

  @pl.when(k == 0)
  def _():
    accout_ref[...] = accin_ref[...] + gamma * base_ref[...]

  start = pl.multiple_of(k * tk, tk)
  accout_ref[...] += jnp.dot(adj_ref[...], ego_ref[pl.ds(start, tk), :],
                             preferred_element_type=jnp.float32)

  @pl.when(k == pl.num_programs(1) - 1)
  def _():
    # new_ego = adj @ ego + gamma * base   (= acc_out - acc_in), bf16 out
    newego_ref[...] = (accout_ref[...] - accin_ref[...]).astype(jnp.bfloat16)


def gcn_layer(adj_bf16, ego_bf16, base, acc, gamma):
  n, w = base.shape
  tm = _gcn_row_tile(n)
  tk = _gcn_k_tile(n)
  row_map = lambda i, k: (i, 0)
  new_ego, acc_out = pl.pallas_call(
      functools.partial(_gcn_layer_kernel, gamma=gamma, tk=tk),
      out_shape=(jax.ShapeDtypeStruct((n, w), jnp.bfloat16),
                 jax.ShapeDtypeStruct((n, w), jnp.float32)),
      grid=(n // tm, n // tk),
      in_specs=[pl.BlockSpec((tm, tk), lambda i, k: (i, k)),   # adj (bf16)
                pl.BlockSpec((n, w), lambda i, k: (0, 0)),     # ego resident
                pl.BlockSpec((tm, w), row_map),                # base
                pl.BlockSpec((tm, w), row_map)],               # acc in
      out_specs=(pl.BlockSpec((tm, w), row_map),
                 pl.BlockSpec((tm, w), row_map)),
      input_output_aliases={3: 1},                             # acc in-place
      compiler_params=_cparams(("parallel", "arbitrary"), vmem_mb=48),
  )(adj_bf16, ego_bf16, base, acc)
  return new_ego, acc_out


# ----------------------------------------------------------------------------
# Kernel 4: user output head (layer-mean scale + user_fusion two-semantic)
# Reads the first n_users rows of the full acc (no wrapper slice).
# ----------------------------------------------------------------------------

def _user_head_kernel(acc_ref, w1, b1, w2, o_ref, *, d, inv_layers):
  x = acc_ref[...] * inv_layers
  e_image = x[:, :d]
  e_text = x[:, d:]
  o_ref[...] = _two_sem(e_text, e_image, w1[...], b1[...], w2[...])


def user_head(acc, n_users, params, dim, inv_layers):
  w = acc.shape[1]
  tm = _row_tile(n_users)
  w1, b1, w2 = params
  return pl.pallas_call(
      functools.partial(_user_head_kernel, d=dim, inv_layers=inv_layers),
      out_shape=jax.ShapeDtypeStruct((n_users, dim), jnp.float32),
      grid=(n_users // tm,),
      in_specs=[pl.BlockSpec((tm, w), lambda i: (i, 0)),
                pl.BlockSpec(w1.shape, lambda i: (0, 0)),
                pl.BlockSpec(b1.shape, lambda i: (0, 0)),
                pl.BlockSpec(w2.shape, lambda i: (0, 0))],
      out_specs=pl.BlockSpec((tm, dim), lambda i: (i, 0)),
      compiler_params=_cparams(("parallel",)),
  )(acc, w1, b1, w2)


# ----------------------------------------------------------------------------
# Kernel 5: item output head (item_fusion -> structure2item, + content)
# Reads the item rows of the full acc via a block offset; content comes from
# an in-kernel column slice of the id_fusion slab.
# ----------------------------------------------------------------------------

def _item_head_kernel(acc_ref, slab_ref, fw1, fb1, fw2,
                      sw, sb, sg, sbeta, o_ref, *, d, inv_layers):
  x = acc_ref[...] * inv_layers
  e_image = x[:, :d]
  e_text = x[:, d:]
  fused = _two_sem(e_text, e_image, fw1[...], fb1[...], fw2[...])
  structure = _mlp_ln(fused, sw[...], sb[...], sg[...], sbeta[...])
  o_ref[...] = structure + slab_ref[:, 5 * d:6 * d]      # + content2item


def item_head(acc, slab, n_users, n_items, fusion_params, struct_params,
              dim, inv_layers):
  w = acc.shape[1]
  tm = _row_tile(n_items)
  fw1, fb1, fw2 = fusion_params
  sw, sb, sg, sbeta = struct_params
  weights = [fw1, fb1, fw2, sw, sb, sg, sbeta]

  if n_users % tm == 0:
    acc_in, off = acc, n_users // tm
  else:
    # TODO(synk): pad n_users to a tile multiple instead of slicing here.
    acc_in, off = acc[n_users:], 0
  acc_map = lambda i: (i + off, 0)

  def full_spec(shape):
    return pl.BlockSpec(shape, lambda i: (0,) * len(shape))

  return pl.pallas_call(
      functools.partial(_item_head_kernel, d=dim, inv_layers=inv_layers),
      out_shape=jax.ShapeDtypeStruct((n_items, dim), jnp.float32),
      grid=(n_items // tm,),
      in_specs=[pl.BlockSpec((tm, w), acc_map),
                pl.BlockSpec((tm, 6 * dim), lambda i: (i, 0))]
               + [full_spec(x.shape) for x in weights],
      out_specs=pl.BlockSpec((tm, dim), lambda i: (i, 0)),
      compiler_params=_cparams(("parallel",)),
  )(acc_in, slab, *weights)


# ----------------------------------------------------------------------------
# Parameter construction (deterministic, in-script)
# ----------------------------------------------------------------------------

def init_params(key, n_users, n_items, dim, img_dim, text_dim):
  ks = iter(jax.random.split(key, 64))

  def rnd(shape, scale=0.1):
    return scale * jax.random.normal(next(ks), shape, dtype=jnp.float32)

  def two_sem_params():
    # query: Linear(d,d) [W1,b1], then Linear(d,1,no bias) stored as (1,d)
    return (rnd((dim, dim)), rnd((1, dim)), rnd((1, dim)))

  return {
      "user_id": rnd((n_users, dim)),
      "item_tid": rnd((n_items, dim)),
      "item_iid": rnd((n_items, dim)),
      "user_pref_image": rnd((n_users, dim)),
      "user_pref_text": rnd((n_users, dim)),
      "image_feats": rnd((n_items, img_dim)),
      "text_feats": rnd((n_items, text_dim)),
      "W_image2item": rnd((img_dim, dim)),
      "b_image2item": rnd((1, dim)),
      "W_text2item": rnd((text_dim, dim)),
      "b_text2item": rnd((1, dim)),
      "image_item": two_sem_params(),
      "text_item": two_sem_params(),
      "fusion_item": two_sem_params(),
      "item_fusion": two_sem_params(),
      "user_fusion": two_sem_params(),
      "content2item": (rnd((dim, dim)), rnd((1, dim)),
                       jnp.ones((1, dim), jnp.float32),
                       jnp.zeros((1, dim), jnp.float32)),
      "structure2item": (rnd((dim, dim)), rnd((1, dim)),
                         jnp.ones((1, dim), jnp.float32),
                         jnp.zeros((1, dim), jnp.float32)),
  }


# ----------------------------------------------------------------------------
# MIDGCN forward (adj_bf16 is pre-cast ONCE outside this traced function)
# ----------------------------------------------------------------------------

def midgcn_forward(p, adj_bf16, n_users, n_items, n_ui_layers, gamma=GAMMA):
  dim = p["user_id"].shape[1]

  # ---- IdFusionModel + content2item + normalized item ego (one kernel) ----
  slab, ego_items = id_fusion(p, n_items, dim)
  image = slab[:, 0:dim]
  text = slab[:, dim:2 * dim]
  item_specific_image = slab[:, 2 * dim:3 * dim]
  item_specific_text = slab[:, 3 * dim:4 * dim]
  item_fusion_embedding = slab[:, 4 * dim:5 * dim]

  # ---- GCN propagation: image channel = cols [0:d), text = cols [d:2d) ----
  ego_users = user_ego(p, n_users, dim)
  ego = jnp.concatenate([ego_users, ego_items], axis=0)     # bf16 (N, 2d)
  acc = ego.astype(jnp.float32)                             # layer-0 term
  base = jnp.concatenate(
      [jnp.concatenate([p["user_id"], p["user_id"]], axis=1),
       jnp.concatenate([p["item_iid"], p["item_tid"]], axis=1)], axis=0)

  for _ in range(n_ui_layers):
    ego, acc = gcn_layer(adj_bf16, ego, base, acc, gamma)

  inv_layers = 1.0 / float(n_ui_layers + 1)                 # layer mean

  # ---- fusion + output heads (read the full acc, no wrapper slices) ----
  u_g_embeddings = user_head(acc, n_users, p["user_fusion"], dim, inv_layers)
  i_g_embeddings = item_head(acc, slab, n_users, n_items, p["item_fusion"],
                             p["structure2item"], dim, inv_layers)

  return (u_g_embeddings, i_g_embeddings, image, p["item_iid"], text,
          p["item_tid"], item_specific_image, item_specific_text,
          item_fusion_embedding)


# ----------------------------------------------------------------------------
# Demo
# ----------------------------------------------------------------------------

if __name__ == "__main__":
  n_users, n_items = 8, 8
  dim = 32
  img_dim, text_dim = 64, 48
  weight_size = [32, 32]          # -> n_ui_layers = 2
  n_ui_layers = len(weight_size)

  key = jax.random.PRNGKey(0)
  pkey, akey = jax.random.split(key)
  params = init_params(pkey, n_users, n_items, dim, img_dim, text_dim)

  n_nodes = n_users + n_items
  # dense stand-in for the (normally sparse) normalized adjacency;
  # cast to bf16 once at setup, NOT inside the jitted forward.
  adj = 0.1 * jax.random.normal(akey, (n_nodes, n_nodes), dtype=jnp.float32)
  adj_bf16 = adj.astype(jnp.bfloat16)

  fwd = jax.jit(functools.partial(
      midgcn_forward, n_users=n_users, n_items=n_items,
      n_ui_layers=n_ui_layers, gamma=GAMMA))
  outs = fwd(params, adj_bf16)
  outs = jax.block_until_ready(outs)

  # light sanity checks on shapes / finiteness
  assert outs[0].shape == (n_users, dim)     # u_g_embeddings
  assert outs[1].shape == (n_items, dim)     # i_g_embeddings
  assert outs[8].shape == (n_items, dim)     # item_fusion_embedding
  assert all(bool(jnp.all(jnp.isfinite(o.astype(jnp.float32)))) for o in outs)

  print("KERNEL_OK")
</pallas_src>

<mosaic_0001>
module attributes {stable_mosaic.version = 11 : i64} {
  func.func @_user_ego_kernel(%arg0: i32, %arg1: memref<8x32xf32, #tpu.memory_space<vmem>>, %arg2: memref<8x32xf32, #tpu.memory_space<vmem>>, %arg3: memref<8x64xbf16, #tpu.memory_space<vmem>>) attributes {dimension_semantics = [#tpu.dimension_semantics<parallel>], iteration_bounds = array<i64: 1>, scalar_prefetch = 0 : i64, scratch_operands = 0 : i64, tpu.core_type = #tpu.core_type<tc>, window_params = [{transform_indices = @transform_0, window_bounds = array<i64: 8, 32>}, {transform_indices = @transform_1, window_bounds = array<i64: 8, 32>}, {transform_indices = @transform_2, window_bounds = array<i64: 8, 64>}]} {
    %c0 = arith.constant 0 : index
    %c0_0 = arith.constant 0 : index
    %0 = vector.load %arg1[%c0, %c0_0] : memref<8x32xf32, #tpu.memory_space<vmem>>, vector<8x32xf32>
    %1 = arith.mulf %0, %0 : vector<8x32xf32>
    %cst = arith.constant dense<0.000000e+00> : vector<8xf32>
    %2 = vector.multi_reduction <add>, %1, %cst [1] : vector<8x32xf32> to vector<8xf32>
    %3 = vector.shape_cast %2 : vector<8xf32> to vector<8x1xf32>
    %cst_1 = arith.constant 1.000000e-24 : f32
    %4 = vector.broadcast %cst_1 : f32 to vector<8x1xf32>
    %5 = arith.maximumf %3, %4 : vector<8x1xf32>
    %6 = math.rsqrt %5 : vector<8x1xf32>
    %7 = vector.broadcast %6 : vector<8x1xf32> to vector<8x32xf32>
    %8 = arith.mulf %0, %7 : vector<8x32xf32>
    %c0_2 = arith.constant 0 : index
    %c0_3 = arith.constant 0 : index
    %9 = vector.load %arg2[%c0_2, %c0_3] : memref<8x32xf32, #tpu.memory_space<vmem>>, vector<8x32xf32>
    %10 = arith.mulf %9, %9 : vector<8x32xf32>
    %cst_4 = arith.constant dense<0.000000e+00> : vector<8xf32>
    %11 = vector.multi_reduction <add>, %10, %cst_4 [1] : vector<8x32xf32> to vector<8xf32>
    %12 = vector.shape_cast %11 : vector<8xf32> to vector<8x1xf32>
    %cst_5 = arith.constant 1.000000e-24 : f32
    %13 = vector.broadcast %cst_5 : f32 to vector<8x1xf32>
    %14 = arith.maximumf %12, %13 : vector<8x1xf32>
    %15 = math.rsqrt %14 : vector<8x1xf32>
    %16 = vector.broadcast %15 : vector<8x1xf32> to vector<8x32xf32>
    %17 = arith.mulf %9, %16 : vector<8x32xf32>
    %18 = tpu.concatenate %8, %17 in 1 : vector<8x32xf32>, vector<8x32xf32> -> vector<8x64xf32>
    %19 = arith.truncf %18 : vector<8x64xf32> to vector<8x64xbf16>
    %c0_6 = arith.constant 0 : index
    %c0_7 = arith.constant 0 : index
    %20 = vector.load %arg3[%c0_6, %c0_7] : memref<8x64xbf16, #tpu.memory_space<vmem>>, vector<8x64xbf16>
    tpu.vector_store %arg3[%c0_6, %c0_7], %19 {strides = array<i32>} : memref<8x64xbf16, #tpu.memory_space<vmem>>, vector<8x64xbf16>,
    return
  }
  func.func @transform_0(%arg0: i32) -> (i32, i32) {
    %c0_i32 = arith.constant 0 : i32
    %c0_i32_0 = arith.constant 0 : i32
    return %arg0, %c0_i32 : i32, i32
  }
  func.func @transform_1(%arg0: i32) -> (i32, i32) {
    %c0_i32 = arith.constant 0 : i32
    %c0_i32_0 = arith.constant 0 : i32
    return %arg0, %c0_i32 : i32, i32
  }
  func.func @transform_2(%arg0: i32) -> (i32, i32) {
    %c0_i32 = arith.constant 0 : i32
    %c0_i32_0 = arith.constant 0 : i32
    return %arg0, %c0_i32 : i32, i32
  }
}

module attributes {stable_mosaic.version = 11 : i64} {
  func.func @_id_fusion_kernel(%arg0: i32, %arg1: memref<8x64xf32, #tpu.memory_space<vmem>>, %arg2: memref<8x48xf32, #tpu.memory_space<vmem>>, %arg3: memref<8x32xf32, #tpu.memory_space<vmem>>, %arg4: memref<8x32xf32, #tpu.memory_space<vmem>>, %arg5: memref<64x32xf32, #tpu.memory_space<vmem>>, %arg6: memref<1x32xf32, #tpu.memory_space<vmem>>, %arg7: memref<48x32xf32, #tpu.memory_space<vmem>>, %arg8: memref<1x32xf32, #tpu.memory_space<vmem>>, %arg9: memref<32x32xf32, #tpu.memory_space<vmem>>, %arg10: memref<1x32xf32, #tpu.memory_space<vmem>>, %arg11: memref<1x32xf32, #tpu.memory_space<vmem>>, %arg12: memref<32x32xf32, #tpu.memory_space<vmem>>, %arg13: memref<1x32xf32, #tpu.memory_space<vmem>>, %arg14: memref<1x32xf32, #tpu.memory_space<vmem>>, %arg15: memref<32x32xf32, #tpu.memory_space<vmem>>, %arg16: memref<1x32xf32, #tpu.memory_space<vmem>>, %arg17: memref<1x32xf32, #tpu.memory_space<vmem>>, %arg18: memref<32x32xf32, #tpu.memory_space<vmem>>, %arg19: memref<1x32xf32, #tpu.memory_space<vmem>>, %arg20: memref<1x32xf32, #tpu.memory_space<vmem>>, %arg21: memref<1x32xf32, #tpu.memory_space<vmem>>, %arg22: memref<8x192xf32, #tpu.memory_space<vmem>>, %arg23: memref<8x64xbf16, #tpu.memory_space<vmem>>) attributes {dimension_semantics = [#tpu.dimension_semantics<parallel>], iteration_bounds = array<i64: 1>, scalar_prefetch = 0 : i64, scratch_operands = 0 : i64, tpu.core_type = #tpu.core_type<tc>, window_params = [{transform_indices = @transform_0, window_bounds = array<i64: 8, 64>}, {transform_indices = @transform_1, window_bounds = array<i64: 8, 48>}, {transform_indices = @transform_2, window_bounds = array<i64: 8, 32>}, {transform_indices = @transform_3, window_bounds = array<i64: 8, 32>}, {pipeline_mode = #tpu.pipeline_mode<synchronous>, transform_indices = @transform_4, window_bounds = array<i64: 64, 32>}, {pipeline_mode = #tpu.pipeline_mode<synchronous>, transform_indices = @transform_5, window_bounds = array<i64: 1, 32>}, {pipeline_mode = #tpu.pipeline_mode<synchronous>, transform_indices = @transform_6, window_bounds = array<i64: 48, 32>}, {pipeline_mode = #tpu.pipeline_mode<synchronous>, transform_indices = @transform_7, window_bounds = array<i64: 1, 32>}, {pipeline_mode = #tpu.pipeline_mode<synchronous>, transform_indices = @transform_8, window_bounds = array<i64: 32, 32>}, {pipeline_mode = #tpu.pipeline_mode<synchronous>, transform_indices = @transform_9, window_bounds = array<i64: 1, 32>}, {pipeline_mode = #tpu.pipeline_mode<synchronous>, transform_indices = @transform_10, window_bounds = array<i64: 1, 32>}, {pipeline_mode = #tpu.pipeline_mode<synchronous>, transform_indices = @transform_11, window_bounds = array<i64: 32, 32>}, {pipeline_mode = #tpu.pipeline_mode<synchronous>, transform_indices = @transform_12, window_bounds = array<i64: 1, 32>}, {pipeline_mode = #tpu.pipeline_mode<synchronous>, transform_indices = @transform_13, window_bounds = array<i64: 1, 32>}, {pipeline_mode = #tpu.pipeline_mode<synchronous>, transform_indices = @transform_14, window_bounds = array<i64: 32, 32>}, {pipeline_mode = #tpu.pipeline_mode<synchronous>, transform_indices = @transform_15, window_bounds = array<i64: 1, 32>}, {pipeline_mode = #tpu.pipeline_mode<synchronous>, transform_indices = @transform_16, window_bounds = array<i64: 1, 32>}, {pipeline_mode = #tpu.pipeline_mode<synchronous>, transform_indices = @transform_17, window_bounds = array<i64: 32, 32>}, {pipeline_mode = #tpu.pipeline_mode<synchronous>, transform_indices = @transform_18, window_bounds = array<i64: 1, 32>}, {pipeline_mode = #tpu.pipeline_mode<synchronous>, transform_indices = @transform_19, window_bounds = array<i64: 1, 32>}, {pipeline_mode = #tpu.pipeline_mode<synchronous>, transform_indices = @transform_20, window_bounds = array<i64: 1, 32>}, {transform_indices = @transform_21, window_bounds = array<i64: 8, 192>}, {transform_indices = @transform_22, window_bounds = array<i64: 8, 64>}]} {
    %c0 = arith.constant 0 : index
    %c0_0 = arith.constant 0 : index
    %0 = vector.load %arg1[%c0, %c0_0] : memref<8x64xf32, #tpu.memory_space<vmem>>, vector<8x64xf32>
    %c0_1 = arith.constant 0 : index
    %c0_2 = arith.constant 0 : index
    %1 = vector.load %arg5[%c0_1, %c0_2] : memref<64x32xf32, #tpu.memory_space<vmem>>, vector<64x32xf32>
    %2 = arith.truncf %0 : vector<8x64xf32> to vector<8x64xbf16>
    %3 = arith.truncf %1 : vector<64x32xf32> to vector<64x32xbf16>
    %cst = arith.constant dense<0.000000e+00> : vector<8x32xf32>
    %4 = tpu.matmul %2, %3, %cst {dimension_numbers = #tpu.dot_dimension_numbers<[1], [0], [0], [1], [0, 0, 1, 1], [], []>} : vector<8x64xbf16>, vector<64x32xbf16>, vector<8x32xf32> -> vector<8x32xf32>
    %c0_3 = arith.constant 0 : index
    %c0_4 = arith.constant 0 : index
    %5 = vector.load %arg6[%c0_3, %c0_4] : memref<1x32xf32, #tpu.memory_space<vmem>>, vector<1x32xf32>
    %6 = vector.broadcast %5 : vector<1x32xf32> to vector<8x32xf32>
    %7 = arith.addf %4, %6 : vector<8x32xf32>
    %c0_5 = arith.constant 0 : index
    %c0_6 = arith.constant 0 : index
    %8 = vector.load %arg2[%c0_5, %c0_6] : memref<8x48xf32, #tpu.memory_space<vmem>>, vector<8x48xf32>
    %c0_7 = arith.constant 0 : index
    %c0_8 = arith.constant 0 : index
    %9 = vector.load %arg7[%c0_7, %c0_8] : memref<48x32xf32, #tpu.memory_space<vmem>>, vector<48x32xf32>
    %10 = arith.truncf %8 : vector<8x48xf32> to vector<8x48xbf16>
    %11 = arith.truncf %9 : vector<48x32xf32> to vector<48x32xbf16>
    %cst_9 = arith.constant dense<0.000000e+00> : vector<8x32xf32>
    %12 = tpu.matmul %10, %11, %cst_9 {dimension_numbers = #tpu.dot_dimension_numbers<[1], [0], [0], [1], [0, 0, 1, 1], [], []>} : vector<8x48xbf16>, vector<48x32xbf16>, vector<8x32xf32> -> vector<8x32xf32>
    %c0_10 = arith.constant 0 : index
    %c0_11 = arith.constant 0 : index
    %13 = vector.load %arg8[%c0_10, %c0_11] : memref<1x32xf32, #tpu.memory_space<vmem>>, vector<1x32xf32>
    %14 = vector.broadcast %13 : vector<1x32xf32> to vector<8x32xf32>
    %15 = arith.addf %12, %14 : vector<8x32xf32>
    %c0_12 = arith.constant 0 : index
    %c0_13 = arith.constant 0 : index
    %16 = vector.load %arg3[%c0_12, %c0_13] : memref<8x32xf32, #tpu.memory_space<vmem>>, vector<8x32xf32>
    %c0_14 = arith.constant 0 : index
    %c0_15 = arith.constant 0 : index
    %17 = vector.load %arg9[%c0_14, %c0_15] : memref<32x32xf32, #tpu.memory_space<vmem>>, vector<32x32xf32>
    %c0_16 = arith.constant 0 : index
    %c0_17 = arith.constant 0 : index
    %18 = vector.load %arg10[%c0_16, %c0_17] : memref<1x32xf32, #tpu.memory_space<vmem>>, vector<1x32xf32>
    %c0_18 = arith.constant 0 : index
    %c0_19 = arith.constant 0 : index
    %19 = vector.load %arg11[%c0_18, %c0_19] : memref<1x32xf32, #tpu.memory_space<vmem>>, vector<1x32xf32>
    %20 = tpu.concatenate %7, %16 in 0 : vector<8x32xf32>, vector<8x32xf32> -> vector<16x32xf32>
    %21 = arith.truncf %20 : vector<16x32xf32> to vector<16x32xbf16>
    %22 = arith.truncf %17 : vector<32x32xf32> to vector<32x32xbf16>
    %cst_20 = arith.constant dense<0.000000e+00> : vector<16x32xf32>
    %23 = tpu.matmul %21, %22, %cst_20 {dimension_numbers = #tpu.dot_dimension_numbers<[1], [0], [0], [1], [0, 0, 1, 1], [], []>} : vector<16x32xbf16>, vector<32x32xbf16>, vector<16x32xf32> -> vector<16x32xf32>
    %24 = vector.broadcast %18 : vector<1x32xf32> to vector<16x32xf32>
    %25 = arith.addf %23, %24 : vector<16x32xf32>
    %26 = math.tanh %25 : vector<16x32xf32>
    %27 = vector.broadcast %19 : vector<1x32xf32> to vector<16x32xf32>
    %28 = arith.mulf %26, %27 : vector<16x32xf32>
    %cst_21 = arith.constant dense<0.000000e+00> : vector<16xf32>
    %29 = vector.multi_reduction <add>, %28, %cst_21 [1] : vector<16x32xf32> to vector<16xf32>
    %30 = vector.shape_cast %29 : vector<16xf32> to vector<16x1xf32>
    %31 = vector.extract_strided_slice %30 {offsets = [0, 0], sizes = [8, 1], strides = [1, 1]} : vector<16x1xf32> to vector<8x1xf32>
    %32 = vector.extract_strided_slice %30 {offsets = [8, 0], sizes = [8, 1], strides = [1, 1]} : vector<16x1xf32> to vector<8x1xf32>
    %33 = arith.subf %31, %32 : vector<8x1xf32>
    %34 = arith.negf %33 : vector<8x1xf32>
    %35 = math.exp %34 : vector<8x1xf32>
    %cst_22 = arith.constant 1.000000e+00 : f32
    %36 = vector.broadcast %cst_22 : f32 to vector<8x1xf32>
    %37 = arith.addf %36, %35 : vector<8x1xf32>
    %38 = arith.divf %36, %37 : vector<8x1xf32>
    %39 = vector.broadcast %38 : vector<8x1xf32> to vector<8x32xf32>
    %40 = arith.mulf %39, %7 : vector<8x32xf32>
    %cst_23 = arith.constant 1.000000e+00 : f32
    %41 = vector.broadcast %cst_23 : f32 to vector<8x1xf32>
    %42 = arith.subf %41, %38 : vector<8x1xf32>
    %43 = vector.broadcast %42 : vector<8x1xf32> to vector<8x32xf32>
    %44 = arith.mulf %43, %16 : vector<8x32xf32>
    %45 = arith.addf %40, %44 : vector<8x32xf32>
    %c0_24 = arith.constant 0 : index
    %c0_25 = arith.constant 0 : index
    %46 = vector.load %arg4[%c0_24, %c0_25] : memref<8x32xf32, #tpu.memory_space<vmem>>, vector<8x32xf32>
    %c0_26 = arith.constant 0 : index
    %c0_27 = arith.constant 0 : index
    %47 = vector.load %arg12[%c0_26, %c0_27] : memref<32x32xf32, #tpu.memory_space<vmem>>, vector<32x32xf32>
    %c0_28 = arith.constant 0 : index
    %c0_29 = arith.constant 0 : index
    %48 = vector.load %arg13[%c0_28, %c0_29] : memref<1x32xf32, #tpu.memory_space<vmem>>, vector<1x32xf32>
    %c0_30 = arith.constant 0 : index
    %c0_31 = arith.constant 0 : index
    %49 = vector.load %arg14[%c0_30, %c0_31] : memref<1x32xf32, #tpu.memory_space<vmem>>, vector<1x32xf32>
    %50 = tpu.concatenate %15, %46 in 0 : vector<8x32xf32>, vector<8x32xf32> -> vector<16x32xf32>
    %51 = arith.truncf %50 : vector<16x32xf32> to vector<16x32xbf16>
    %52 = arith.truncf %47 : vector<32x32xf32> to vector<32x32xbf16>
    %cst_32 = arith.constant dense<0.000000e+00> : vector<16x32xf32>
    %53 = tpu.matmul %51, %52, %cst_32 {dimension_numbers = #tpu.dot_dimension_numbers<[1], [0], [0], [1], [0, 0, 1, 1], [], []>} : vector<16x32xbf16>, vector<32x32xbf16>, vector<16x32xf32> -> vector<16x32xf32>
    %54 = vector.broadcast %48 : vector<1x32xf32> to vector<16x32xf32>
    %55 = arith.addf %53, %54 : vector<16x32xf32>
    %56 = math.tanh %55 : vector<16x32xf32>
    %57 = vector.broadcast %49 : vector<1x32xf32> to vector<16x32xf32>
    %58 = arith.mulf %56, %57 : vector<16x32xf32>
    %cst_33 = arith.constant dense<0.000000e+00> : vector<16xf32>
    %59 = vector.multi_reduction <add>, %58, %cst_33 [1] : vector<16x32xf32> to vector<16xf32>
    %60 = vector.shape_cast %59 : vector<16xf32> to vector<16x1xf32>
    %61 = vector.extract_strided_slice %60 {offsets = [0, 0], sizes = [8, 1], strides = [1, 1]} : vector<16x1xf32> to vector<8x1xf32>
    %62 = vector.extract_strided_slice %60 {offsets = [8, 0], sizes = [8, 1], strides = [1, 1]} : vector<16x1xf32> to vector<8x1xf32>
    %63 = arith.subf %61, %62 : vector<8x1xf32>
    %64 = arith.negf %63 : vector<8x1xf32>
    %65 = math.exp %64 : vector<8x1xf32>
    %cst_34 = arith.constant 1.000000e+00 : f32
    %66 = vector.broadcast %cst_34 : f32 to vector<8x1xf32>
    %67 = arith.addf %66, %65 : vector<8x1xf32>
    %68 = arith.divf %66, %67 : vector<8x1xf32>
    %69 = vector.broadcast %68 : vector<8x1xf32> to vector<8x32xf32>
    %70 = arith.mulf %69, %15 : vector<8x32xf32>
    %cst_35 = arith.constant 1.000000e+00 : f32
    %71 = vector.broadcast %cst_35 : f32 to vector<8x1xf32>
    %72 = arith.subf %71, %68 : vector<8x1xf32>
    %73 = vector.broadcast %72 : vector<8x1xf32> to vector<8x32xf32>
    %74 = arith.mulf %73, %46 : vector<8x32xf32>
    %75 = arith.addf %70, %74 : vector<8x32xf32>
    %c0_36 = arith.constant 0 : index
    %c0_37 = arith.constant 0 : index
    %76 = vector.load %arg15[%c0_36, %c0_37] : memref<32x32xf32, #tpu.memory_space<vmem>>, vector<32x32xf32>
    %c0_38 = arith.constant 0 : index
    %c0_39 = arith.constant 0 : index
    %77 = vector.load %arg16[%c0_38, %c0_39] : memref<1x32xf32, #tpu.memory_space<vmem>>, vector<1x32xf32>
    %c0_40 = arith.constant 0 : index
    %c0_41 = arith.constant 0 : index
    %78 = vector.load %arg17[%c0_40, %c0_41] : memref<1x32xf32, #tpu.memory_space<vmem>>, vector<1x32xf32>
    %79 = tpu.concatenate %45, %75 in 0 : vector<8x32xf32>, vector<8x32xf32> -> vector<16x32xf32>
    %80 = arith.truncf %79 : vector<16x32xf32> to vector<16x32xbf16>
    %81 = arith.truncf %76 : vector<32x32xf32> to vector<32x32xbf16>
    %cst_42 = arith.constant dense<0.000000e+00> : vector<16x32xf32>
    %82 = tpu.matmul %80, %81, %cst_42 {dimension_numbers = #tpu.dot_dimension_numbers<[1], [0], [0], [1], [0, 0, 1, 1], [], []>} : vector<16x32xbf16>, vector<32x32xbf16>, vector<16x32xf32> -> vector<16x32xf32>
    %83 = vector.broadcast %77 : vector<1x32xf32> to vector<16x32xf32>
    %84 = arith.addf %82, %83 : vector<16x32xf32>
    %85 = math.tanh %84 : vector<16x32xf32>
    %86 = vector.broadcast %78 : vector<1x32xf32> to vector<16x32xf32>
    %87 = arith.mulf %85, %86 : vector<16x32xf32>
    %cst_43 = arith.constant dense<0.000000e+00> : vector<16xf32>
    %88 = vector.multi_reduction <add>, %87, %cst_43 [1] : vector<16x32xf32> to vector<16xf32>
    %89 = vector.shape_cast %88 : vector<16xf32> to vector<16x1xf32>
    %90 = vector.extract_strided_slice %89 {offsets = [0, 0], sizes = [8, 1], strides = [1, 1]} : vector<16x1xf32> to vector<8x1xf32>
    %91 = vector.extract_strided_slice %89 {offsets = [8, 0], sizes = [8, 1], strides = [1, 1]} : vector<16x1xf32> to vector<8x1xf32>
    %92 = arith.subf %90, %91 : vector<8x1xf32>
    %93 = arith.negf %92 : vector<8x1xf32>
    %94 = math.exp %93 : vector<8x1xf32>
    %cst_44 = arith.constant 1.000000e+00 : f32
    %95 = vector.broadcast %cst_44 : f32 to vector<8x1xf32>
    %96 = arith.addf %95, %94 : vector<8x1xf32>
    %97 = arith.divf %95, %96 : vector<8x1xf32>
    %98 = vector.broadcast %97 : vector<8x1xf32> to vector<8x32xf32>
    %99 = arith.mulf %98, %45 : vector<8x32xf32>
    %cst_45 = arith.constant 1.000000e+00 : f32
    %100 = vector.broadcast %cst_45 : f32 to vector<8x1xf32>
    %101 = arith.subf %100, %97 : vector<8x1xf32>
    %102 = vector.broadcast %101 : vector<8x1xf32> to vector<8x32xf32>
    %103 = arith.mulf %102, %75 : vector<8x32xf32>
    %104 = arith.addf %99, %103 : vector<8x32xf32>
    %c0_46 = arith.constant 0 : index
    %c0_47 = arith.constant 0 : index
    %105 = vector.load %arg18[%c0_46, %c0_47] : memref<32x32xf32, #tpu.memory_space<vmem>>, vector<32x32xf32>
    %c0_48 = arith.constant 0 : index
    %c0_49 = arith.constant 0 : index
    %106 = vector.load %arg19[%c0_48, %c0_49] : memref<1x32xf32, #tpu.memory_space<vmem>>, vector<1x32xf32>
    %c0_50 = arith.constant 0 : index
    %c0_51 = arith.constant 0 : index
    %107 = vector.load %arg20[%c0_50, %c0_51] : memref<1x32xf32, #tpu.memory_space<vmem>>, vector<1x32xf32>
    %c0_52 = arith.constant 0 : index
    %c0_53 = arith.constant 0 : index
    %108 = vector.load %arg21[%c0_52, %c0_53] : memref<1x32xf32, #tpu.memory_space<vmem>>, vector<1x32xf32>
    %109 = arith.truncf %104 : vector<8x32xf32> to vector<8x32xbf16>
    %110 = arith.truncf %105 : vector<32x32xf32> to vector<32x32xbf16>
    %cst_54 = arith.constant dense<0.000000e+00> : vector<8x32xf32>
    %111 = tpu.matmul %109, %110, %cst_54 {dimension_numbers = #tpu.dot_dimension_numbers<[1], [0], [0], [1], [0, 0, 1, 1], [], []>} : vector<8x32xbf16>, vector<32x32xbf16>, vector<8x32xf32> -> vector<8x32xf32>
    %112 = vector.broadcast %106 : vector<1x32xf32> to vector<8x32xf32>
    %113 = arith.addf %111, %112 : vector<8x32xf32>
    %cst_55 = arith.constant 0.000000e+00 : f32
    %114 = vector.broadcast %cst_55 : f32 to vector<8x32xf32>
    %115 = arith.maximumf %113, %114 : vector<8x32xf32>
    %cst_56 = arith.constant dense<0.000000e+00> : vector<8xf32>
    %116 = vector.multi_reduction <add>, %115, %cst_56 [1] : vector<8x32xf32> to vector<8xf32>
    %117 = vector.shape_cast %116 : vector<8xf32> to vector<8x1xf32>
    %cst_57 = arith.constant 3.200000e+01 : f32
    %118 = vector.broadcast %cst_57 : f32 to vector<8x1xf32>
    %119 = arith.divf %117, %118 : vector<8x1xf32>
    %120 = vector.broadcast %119 : vector<8x1xf32> to vector<8x32xf32>
    %121 = arith.subf %115, %120 : vector<8x32xf32>
    %122 = arith.mulf %121, %121 : vector<8x32xf32>
    %cst_58 = arith.constant dense<0.000000e+00> : vector<8xf32>
    %123 = vector.multi_reduction <add>, %122, %cst_58 [1] : vector<8x32xf32> to vector<8xf32>
    %124 = vector.shape_cast %123 : vector<8xf32> to vector<8x1xf32>
    %cst_59 = arith.constant 3.200000e+01 : f32
    %125 = vector.broadcast %cst_59 : f32 to vector<8x1xf32>
    %126 = arith.divf %124, %125 : vector<8x1xf32>
    %127 = vector.broadcast %119 : vector<8x1xf32> to vector<8x32xf32>
    %128 = arith.subf %115, %127 : vector<8x32xf32>
    %cst_60 = arith.constant 9.99999997E-7 : f32
    %129 = vector.broadcast %cst_60 : f32 to vector<8x1xf32>
    %130 = arith.addf %126, %129 : vector<8x1xf32>
    %131 = math.rsqrt %130 : vector<8x1xf32>
    %132 = vector.broadcast %131 : vector<8x1xf32> to vector<8x32xf32>
    %133 = arith.mulf %128, %132 : vector<8x32xf32>
    %134 = vector.broadcast %107 : vector<1x32xf32> to vector<8x32xf32>
    %135 = arith.mulf %133, %134 : vector<8x32xf32>
    %136 = vector.broadcast %108 : vector<1x32xf32> to vector<8x32xf32>
    %137 = arith.addf %135, %136 : vector<8x32xf32>
    %138 = tpu.concatenate %7, %15, %45, %75, %104, %137 in 1 : vector<8x32xf32>, vector<8x32xf32>, vector<8x32xf32>, vector<8x32xf32>, vector<8x32xf32>, vector<8x32xf32> -> vector<8x192xf32>
    %c0_61 = arith.constant 0 : index
    %c0_62 = arith.constant 0 : index
    %139 = vector.load %arg22[%c0_61, %c0_62] : memref<8x192xf32, #tpu.memory_space<vmem>>, vector<8x192xf32>
    tpu.vector_store %arg22[%c0_61, %c0_62], %138 {strides = array<i32>} : memref<8x192xf32, #tpu.memory_space<vmem>>, vector<8x192xf32>,
    %140 = arith.mulf %7, %7 : vector<8x32xf32>
    %cst_63 = arith.constant dense<0.000000e+00> : vector<8xf32>
    %141 = vector.multi_reduction <add>, %140, %cst_63 [1] : vector<8x32xf32> to vector<8xf32>
    %142 = vector.shape_cast %141 : vector<8xf32> to vector<8x1xf32>
    %cst_64 = arith.constant 1.000000e-24 : f32
    %143 = vector.broadcast %cst_64 : f32 to vector<8x1xf32>
    %144 = arith.maximumf %142, %143 : vector<8x1xf32>
    %145 = math.rsqrt %144 : vector<8x1xf32>
    %146 = vector.broadcast %145 : vector<8x1xf32> to vector<8x32xf32>
    %147 = arith.mulf %7, %146 : vector<8x32xf32>
    %148 = arith.mulf %15, %15 : vector<8x32xf32>
    %cst_65 = arith.constant dense<0.000000e+00> : vector<8xf32>
    %149 = vector.multi_reduction <add>, %148, %cst_65 [1] : vector<8x32xf32> to vector<8xf32>
    %150 = vector.shape_cast %149 : vector<8xf32> to vector<8x1xf32>
    %cst_66 = arith.constant 1.000000e-24 : f32
    %151 = vector.broadcast %cst_66 : f32 to vector<8x1xf32>
    %152 = arith.maximumf %150, %151 : vector<8x1xf32>
    %153 = math.rsqrt %152 : vector<8x1xf32>
    %154 = vector.broadcast %153 : vector<8x1xf32> to vector<8x32xf32>
    %155 = arith.mulf %15, %154 : vector<8x32xf32>
    %156 = tpu.concatenate %147, %155 in 1 : vector<8x32xf32>, vector<8x32xf32> -> vector<8x64xf32>
    %157 = arith.truncf %156 : vector<8x64xf32> to vector<8x64xbf16>
    %c0_67 = arith.constant 0 : index
    %c0_68 = arith.constant 0 : index
    %158 = vector.load %arg23[%c0_67, %c0_68] : memref<8x64xbf16, #tpu.memory_space<vmem>>, vector<8x64xbf16>
    tpu.vector_store %arg23[%c0_67, %c0_68], %157 {strides = array<i32>} : memref<8x64xbf16, #tpu.memory_space<vmem>>, vector<8x64xbf16>,
    return
  }
  func.func @transform_0(%arg0: i32) -> (i32, i32) {
    %c0_i32 = arith.constant 0 : i32
    %c0_i32_0 = arith.constant 0 : i32
    return %arg0, %c0_i32 : i32, i32
  }
  func.func @transform_1(%arg0: i32) -> (i32, i32) {
    %c0_i32 = arith.constant 0 : i32
    %c0_i32_0 = arith.constant 0 : i32
    return %arg0, %c0_i32 : i32, i32
  }
  func.func @transform_2(%arg0: i32) -> (i32, i32) {
    %c0_i32 = arith.constant 0 : i32
    %c0_i32_0 = arith.constant 0 : i32
    return %arg0, %c0_i32 : i32, i32
  }
  func.func @transform_3(%arg0: i32) -> (i32, i32) {
    %c0_i32 = arith.constant 0 : i32
    %c0_i32_0 = arith.constant 0 : i32
    return %arg0, %c0_i32 : i32, i32
  }
  func.func @transform_4(%arg0: i32) -> (i32, i32) {
    %c0_i32 = arith.constant 0 : i32
    %c0_i32_0 = arith.constant 0 : i32
    %c0_i32_1 = arith.constant 0 : i32
    return %c0_i32, %c0_i32_0 : i32, i32
  }
  func.func @transform_5(%arg0: i32) -> (i32, i32) {
    %c0_i32 = arith.constant 0 : i32
    %c0_i32_0 = arith.constant 0 : i32
    %c0_i32_1 = arith.constant 0 : i32
    return %c0_i32, %c0_i32_0 : i32, i32
  }
  func.func @transform_6(%arg0: i32) -> (i32, i32) {
    %c0_i32 = arith.constant 0 : i32
    %c0_i32_0 = arith.constant 0 : i32
    %c0_i32_1 = arith.constant 0 : i32
    return %c0_i32, %c0_i32_0 : i32, i32
  }
  func.func @transform_7(%arg0: i32) -> (i32, i32) {
    %c0_i32 = arith.constant 0 : i32
    %c0_i32_0 = arith.constant 0 : i32
    %c0_i32_1 = arith.constant 0 : i32
    return %c0_i32, %c0_i32_0 : i32, i32
  }
  func.func @transform_8(%arg0: i32) -> (i32, i32) {
    %c0_i32 = arith.constant 0 : i32
    %c0_i32_0 = arith.constant 0 : i32
    %c0_i32_1 = arith.constant 0 : i32
    return %c0_i32, %c0_i32_0 : i32, i32
  }
  func.func @transform_9(%arg0: i32) -> (i32, i32) {
    %c0_i32 = arith.constant 0 : i32
    %c0_i32_0 = arith.constant 0 : i32
    %c0_i32_1 = arith.constant 0 : i32
    return %c0_i32, %c0_i32_0 : i32, i32
  }
  func.func @transform_10(%arg0: i32) -> (i32, i32) {
    %c0_i32 = arith.constant 0 : i32
    %c0_i32_0 = arith.constant 0 : i32
    %c0_i32_1 = arith.constant 0 : i32
    return %c0_i32, %c0_i32_0 : i32, i32
  }
  func.func @transform_11(%arg0: i32) -> (i32, i32) {
    %c0_i32 = arith.constant 0 : i32
    %c0_i32_0 = arith.constant 0 : i32
    %c0_i32_1 = arith.constant 0 : i32
    return %c0_i32, %c0_i32_0 : i32, i32
  }
  func.func @transform_12(%arg0: i32) -> (i32, i32) {
    %c0_i32 = arith.constant 0 : i32
    %c0_i32_0 = arith.constant 0 : i32
    %c0_i32_1 = arith.constant 0 : i32
    return %c0_i32, %c0_i32_0 : i32, i32
  }
  func.func @transform_13(%arg0: i32) -> (i32, i32) {
    %c0_i32 = arith.constant 0 : i32
    %c0_i32_0 = arith.constant 0 : i32
    %c0_i32_1 = arith.constant 0 : i32
    return %c0_i32, %c0_i32_0 : i32, i32
  }
  func.func @transform_14(%arg0: i32) -> (i32, i32) {
    %c0_i32 = arith.constant 0 : i32
    %c0_i32_0 = arith.constant 0 : i32
    %c0_i32_1 = arith.constant 0 : i32
    return %c0_i32, %c0_i32_0 : i32, i32
  }
  func.func @transform_15(%arg0: i32) -> (i32, i32) {
    %c0_i32 = arith.constant 0 : i32
    %c0_i32_0 = arith.constant 0 : i32
    %c0_i32_1 = arith.constant 0 : i32
    return %c0_i32, %c0_i32_0 : i32, i32
  }
  func.func @transform_16(%arg0: i32) -> (i32, i32) {
    %c0_i32 = arith.constant 0 : i32
    %c0_i32_0 = arith.constant 0 : i32
    %c0_i32_1 = arith.constant 0 : i32
    return %c0_i32, %c0_i32_0 : i32, i32
  }
  func.func @transform_17(%arg0: i32) -> (i32, i32) {
    %c0_i32 = arith.constant 0 : i32
    %c0_i32_0 = arith.constant 0 : i32
    %c0_i32_1 = arith.constant 0 : i32
    return %c0_i32, %c0_i32_0 : i32, i32
  }
  func.func @transform_18(%arg0: i32) -> (i32, i32) {
    %c0_i32 = arith.constant 0 : i32
    %c0_i32_0 = arith.constant 0 : i32
    %c0_i32_1 = arith.constant 0 : i32
    return %c0_i32, %c0_i32_0 : i32, i32
  }
  func.func @transform_19(%arg0: i32) -> (i32, i32) {
    %c0_i32 = arith.constant 0 : i32
    %c0_i32_0 = arith.constant 0 : i32
    %c0_i32_1 = arith.constant 0 : i32
    return %c0_i32, %c0_i32_0 : i32, i32
  }
  func.func @transform_20(%arg0: i32) -> (i32, i32) {
    %c0_i32 = arith.constant 0 : i32
    %c0_i32_0 = arith.constant 0 : i32
    %c0_i32_1 = arith.constant 0 : i32
    return %c0_i32, %c0_i32_0 : i32, i32
  }
  func.func @transform_21(%arg0: i32) -> (i32, i32) {
    %c0_i32 = arith.constant 0 : i32
    %c0_i32_0 = arith.constant 0 : i32
    return %arg0, %c0_i32 : i32, i32
  }
  func.func @transform_22(%arg0: i32) -> (i32, i32) {
    %c0_i32 = arith.constant 0 : i32
    %c0_i32_0 = arith.constant 0 : i32
    return %arg0, %c0_i32 : i32, i32
  }
}

module attributes {stable_mosaic.version = 11 : i64} {
  func.func @_gcn_layer_kernel(%arg0: i32, %arg1: i32, %arg2: memref<16x16xbf16, #tpu.memory_space<vmem>>, %arg3: memref<16x64xbf16, #tpu.memory_space<vmem>>, %arg4: memref<16x64xf32, #tpu.memory_space<vmem>>, %arg5: memref<16x64xf32, #tpu.memory_space<vmem>>, %arg6: memref<16x64xbf16, #tpu.memory_space<vmem>>, %arg7: memref<16x64xf32, #tpu.memory_space<vmem>>) attributes {dimension_semantics = [#tpu.dimension_semantics<parallel>, #tpu.dimension_semantics<arbitrary>], iteration_bounds = array<i64: 1, 1>, scalar_prefetch = 0 : i64, scratch_operands = 0 : i64, tpu.core_type = #tpu.core_type<tc>, window_params = [{transform_indices = @transform_0, window_bounds = array<i64: 16, 16>}, {pipeline_mode = #tpu.pipeline_mode<synchronous>, transform_indices = @transform_1, window_bounds = array<i64: 16, 64>}, {transform_indices = @transform_2, window_bounds = array<i64: 16, 64>}, {transform_indices = @transform_3, window_bounds = array<i64: 16, 64>}, {transform_indices = @transform_4, window_bounds = array<i64: 16, 64>}, {transform_indices = @transform_5, window_bounds = array<i64: 16, 64>}]} {
    %c0_i32 = arith.constant 0 : i32
    %0 = arith.cmpi eq, %arg1, %c0_i32 : i32
    %1 = arith.extui %0 : i1 to i32
    %c0_i32_0 = arith.constant 0 : i32
    %2 = arith.cmpi ne, %1, %c0_i32_0 : i32
    scf.if %2 {
      %c0_9 = arith.constant 0 : index
      %c0_10 = arith.constant 0 : index
      %15 = vector.load %arg5[%c0_9, %c0_10] : memref<16x64xf32, #tpu.memory_space<vmem>>, vector<16x64xf32>
      %c0_11 = arith.constant 0 : index
      %c0_12 = arith.constant 0 : index
      %16 = vector.load %arg4[%c0_11, %c0_12] : memref<16x64xf32, #tpu.memory_space<vmem>>, vector<16x64xf32>
      %cst_13 = arith.constant 5.000000e-01 : f32
      %17 = vector.broadcast %cst_13 : f32 to vector<16x64xf32>
      %18 = arith.mulf %17, %16 : vector<16x64xf32>
      %19 = arith.addf %15, %18 : vector<16x64xf32>
      %c0_14 = arith.constant 0 : index
      %c0_15 = arith.constant 0 : index
      %20 = vector.load %arg7[%c0_14, %c0_15] : memref<16x64xf32, #tpu.memory_space<vmem>>, vector<16x64xf32>
      tpu.vector_store %arg7[%c0_14, %c0_15], %19 {strides = array<i32>} : memref<16x64xf32, #tpu.memory_space<vmem>>, vector<16x64xf32>,
    } else {
    }
    %c16_i32 = arith.constant 16 : i32
    %3 = arith.muli %arg1, %c16_i32 : i32
    %4 = tpu.assume_multiple %3, 16 : i32
    %c0 = arith.constant 0 : index
    %c0_1 = arith.constant 0 : index
    %5 = vector.load %arg7[%c0, %c0_1] : memref<16x64xf32, #tpu.memory_space<vmem>>, vector<16x64xf32>
    %c0_2 = arith.constant 0 : index
    %c0_3 = arith.constant 0 : index
    %6 = vector.load %arg2[%c0_2, %c0_3] : memref<16x16xbf16, #tpu.memory_space<vmem>>, vector<16x16xbf16>
    %7 = arith.index_cast %4 : i32 to index
    %c0_4 = arith.constant 0 : index
    %8 = vector.load %arg3[%7, %c0_4] : memref<16x64xbf16, #tpu.memory_space<vmem>>, vector<16x64xbf16>
    %cst = arith.constant dense<0.000000e+00> : vector<16x64xf32>
    %9 = tpu.matmul %6, %8, %cst {dimension_numbers = #tpu.dot_dimension_numbers<[1], [0], [0], [1], [0, 0, 1, 1], [], []>} : vector<16x16xbf16>, vector<16x64xbf16>, vector<16x64xf32> -> vector<16x64xf32>
    %10 = arith.addf %5, %9 : vector<16x64xf32>
    %c0_5 = arith.constant 0 : index
    %c0_6 = arith.constant 0 : index
    %11 = vector.load %arg7[%c0_5, %c0_6] : memref<16x64xf32, #tpu.memory_space<vmem>>, vector<16x64xf32>
    tpu.vector_store %arg7[%c0_5, %c0_6], %10 {strides = array<i32>} : memref<16x64xf32, #tpu.memory_space<vmem>>, vector<16x64xf32>,
    %c0_i32_7 = arith.constant 0 : i32
    %12 = arith.cmpi eq, %arg1, %c0_i32_7 : i32
    %13 = arith.extui %12 : i1 to i32
    %c0_i32_8 = arith.constant 0 : i32
    %14 = arith.cmpi ne, %13, %c0_i32_8 : i32
    scf.if %14 {
      %c0_9 = arith.constant 0 : index
      %c0_10 = arith.constant 0 : index
      %15 = vector.load %arg7[%c0_9, %c0_10] : memref<16x64xf32, #tpu.memory_space<vmem>>, vector<16x64xf32>
      %c0_11 = arith.constant 0 : index
      %c0_12 = arith.constant 0 : index
      %16 = vector.load %arg5[%c0_11, %c0_12] : memref<16x64xf32, #tpu.memory_space<vmem>>, vector<16x64xf32>
      %17 = arith.subf %15, %16 : vector<16x64xf32>
      %18 = arith.truncf %17 : vector<16x64xf32> to vector<16x64xbf16>
      %c0_13 = arith.constant 0 : index
      %c0_14 = arith.constant 0 : index
      %19 = vector.load %arg6[%c0_13, %c0_14] : memref<16x64xbf16, #tpu.memory_space<vmem>>, vector<16x64xbf16>
      tpu.vector_store %arg6[%c0_13, %c0_14], %18 {strides = array<i32>} : memref<16x64xbf16, #tpu.memory_space<vmem>>, vector<16x64xbf16>,
    } else {
    }
    return
  }
  func.func @transform_0(%arg0: i32, %arg1: i32) -> (i32, i32) {
    %c0_i32 = arith.constant 0 : i32
    return %arg0, %arg1 : i32, i32
  }
  func.func @transform_1(%arg0: i32, %arg1: i32) -> (i32, i32) {
    %c0_i32 = arith.constant 0 : i32
    %c0_i32_0 = arith.constant 0 : i32
    %c0_i32_1 = arith.constant 0 : i32
    return %c0_i32, %c0_i32_0 : i32, i32
  }
  func.func @transform_2(%arg0: i32, %arg1: i32) -> (i32, i32) {
    %c0_i32 = arith.constant 0 : i32
    %c0_i32_0 = arith.constant 0 : i32
    return %arg0, %c0_i32 : i32, i32
  }
  func.func @transform_3(%arg0: i32, %arg1: i32) -> (i32, i32) {
    %c0_i32 = arith.constant 0 : i32
    %c0_i32_0 = arith.constant 0 : i32
    return %arg0, %c0_i32 : i32, i32
  }
  func.func @transform_4(%arg0: i32, %arg1: i32) -> (i32, i32) {
    %c0_i32 = arith.constant 0 : i32
    %c0_i32_0 = arith.constant 0 : i32
    return %arg0, %c0_i32 : i32, i32
  }
  func.func @transform_5(%arg0: i32, %arg1: i32) -> (i32, i32) {
    %c0_i32 = arith.constant 0 : i32
    %c0_i32_0 = arith.constant 0 : i32
    return %arg0, %c0_i32 : i32, i32
  }
}

module attributes {stable_mosaic.version = 11 : i64} {
  func.func @_gcn_layer_kernel(%arg0: i32, %arg1: i32, %arg2: memref<16x16xbf16, #tpu.memory_space<vmem>>, %arg3: memref<16x64xbf16, #tpu.memory_space<vmem>>, %arg4: memref<16x64xf32, #tpu.memory_space<vmem>>, %arg5: memref<16x64xf32, #tpu.memory_space<vmem>>, %arg6: memref<16x64xbf16, #tpu.memory_space<vmem>>, %arg7: memref<16x64xf32, #tpu.memory_space<vmem>>) attributes {dimension_semantics = [#tpu.dimension_semantics<parallel>, #tpu.dimension_semantics<arbitrary>], iteration_bounds = array<i64: 1, 1>, scalar_prefetch = 0 : i64, scratch_operands = 0 : i64, tpu.core_type = #tpu.core_type<tc>, window_params = [{transform_indices = @transform_0, window_bounds = array<i64: 16, 16>}, {pipeline_mode = #tpu.pipeline_mode<synchronous>, transform_indices = @transform_1, window_bounds = array<i64: 16, 64>}, {transform_indices = @transform_2, window_bounds = array<i64: 16, 64>}, {transform_indices = @transform_3, window_bounds = array<i64: 16, 64>}, {transform_indices = @transform_4, window_bounds = array<i64: 16, 64>}, {transform_indices = @transform_5, window_bounds = array<i64: 16, 64>}]} {
    %c0_i32 = arith.constant 0 : i32
    %0 = arith.cmpi eq, %arg1, %c0_i32 : i32
    %1 = arith.extui %0 : i1 to i32
    %c0_i32_0 = arith.constant 0 : i32
    %2 = arith.cmpi ne, %1, %c0_i32_0 : i32
    scf.if %2 {
      %c0_9 = arith.constant 0 : index
      %c0_10 = arith.constant 0 : index
      %15 = vector.load %arg5[%c0_9, %c0_10] : memref<16x64xf32, #tpu.memory_space<vmem>>, vector<16x64xf32>
      %c0_11 = arith.constant 0 : index
      %c0_12 = arith.constant 0 : index
      %16 = vector.load %arg4[%c0_11, %c0_12] : memref<16x64xf32, #tpu.memory_space<vmem>>, vector<16x64xf32>
      %cst_13 = arith.constant 5.000000e-01 : f32
      %17 = vector.broadcast %cst_13 : f32 to vector<16x64xf32>
      %18 = arith.mulf %17, %16 : vector<16x64xf32>
      %19 = arith.addf %15, %18 : vector<16x64xf32>
      %c0_14 = arith.constant 0 : index
      %c0_15 = arith.constant 0 : index
      %20 = vector.load %arg7[%c0_14, %c0_15] : memref<16x64xf32, #tpu.memory_space<vmem>>, vector<16x64xf32>
      tpu.vector_store %arg7[%c0_14, %c0_15], %19 {strides = array<i32>} : memref<16x64xf32, #tpu.memory_space<vmem>>, vector<16x64xf32>,
    } else {
    }
    %c16_i32 = arith.constant 16 : i32
    %3 = arith.muli %arg1, %c16_i32 : i32
    %4 = tpu.assume_multiple %3, 16 : i32
    %c0 = arith.constant 0 : index
    %c0_1 = arith.constant 0 : index
    %5 = vector.load %arg7[%c0, %c0_1] : memref<16x64xf32, #tpu.memory_space<vmem>>, vector<16x64xf32>
    %c0_2 = arith.constant 0 : index
    %c0_3 = arith.constant 0 : index
    %6 = vector.load %arg2[%c0_2, %c0_3] : memref<16x16xbf16, #tpu.memory_space<vmem>>, vector<16x16xbf16>
    %7 = arith.index_cast %4 : i32 to index
    %c0_4 = arith.constant 0 : index
    %8 = vector.load %arg3[%7, %c0_4] : memref<16x64xbf16, #tpu.memory_space<vmem>>, vector<16x64xbf16>
    %cst = arith.constant dense<0.000000e+00> : vector<16x64xf32>
    %9 = tpu.matmul %6, %8, %cst {dimension_numbers = #tpu.dot_dimension_numbers<[1], [0], [0], [1], [0, 0, 1, 1], [], []>} : vector<16x16xbf16>, vector<16x64xbf16>, vector<16x64xf32> -> vector<16x64xf32>
    %10 = arith.addf %5, %9 : vector<16x64xf32>
    %c0_5 = arith.constant 0 : index
    %c0_6 = arith.constant 0 : index
    %11 = vector.load %arg7[%c0_5, %c0_6] : memref<16x64xf32, #tpu.memory_space<vmem>>, vector<16x64xf32>
    tpu.vector_store %arg7[%c0_5, %c0_6], %10 {strides = array<i32>} : memref<16x64xf32, #tpu.memory_space<vmem>>, vector<16x64xf32>,
    %c0_i32_7 = arith.constant 0 : i32
    %12 = arith.cmpi eq, %arg1, %c0_i32_7 : i32
    %13 = arith.extui %12 : i1 to i32
    %c0_i32_8 = arith.constant 0 : i32
    %14 = arith.cmpi ne, %13, %c0_i32_8 : i32
    scf.if %14 {
      %c0_9 = arith.constant 0 : index
      %c0_10 = arith.constant 0 : index
      %15 = vector.load %arg7[%c0_9, %c0_10] : memref<16x64xf32, #tpu.memory_space<vmem>>, vector<16x64xf32>
      %c0_11 = arith.constant 0 : index
      %c0_12 = arith.constant 0 : index
      %16 = vector.load %arg5[%c0_11, %c0_12] : memref<16x64xf32, #tpu.memory_space<vmem>>, vector<16x64xf32>
      %17 = arith.subf %15, %16 : vector<16x64xf32>
      %18 = arith.truncf %17 : vector<16x64xf32> to vector<16x64xbf16>
      %c0_13 = arith.constant 0 : index
      %c0_14 = arith.constant 0 : index
      %19 = vector.load %arg6[%c0_13, %c0_14] : memref<16x64xbf16, #tpu.memory_space<vmem>>, vector<16x64xbf16>
      tpu.vector_store %arg6[%c0_13, %c0_14], %18 {strides = array<i32>} : memref<16x64xbf16, #tpu.memory_space<vmem>>, vector<16x64xbf16>,
    } else {
    }
    return
  }
  func.func @transform_0(%arg0: i32, %arg1: i32) -> (i32, i32) {
    %c0_i32 = arith.constant 0 : i32
    return %arg0, %arg1 : i32, i32
  }
  func.func @transform_1(%arg0: i32, %arg1: i32) -> (i32, i32) {
    %c0_i32 = arith.constant 0 : i32
    %c0_i32_0 = arith.constant 0 : i32
    %c0_i32_1 = arith.constant 0 : i32
    return %c0_i32, %c0_i32_0 : i32, i32
  }
  func.func @transform_2(%arg0: i32, %arg1: i32) -> (i32, i32) {
    %c0_i32 = arith.constant 0 : i32
    %c0_i32_0 = arith.constant 0 : i32
    return %arg0, %c0_i32 : i32, i32
  }
  func.func @transform_3(%arg0: i32, %arg1: i32) -> (i32, i32) {
    %c0_i32 = arith.constant 0 : i32
    %c0_i32_0 = arith.constant 0 : i32
    return %arg0, %c0_i32 : i32, i32
  }
  func.func @transform_4(%arg0: i32, %arg1: i32) -> (i32, i32) {
    %c0_i32 = arith.constant 0 : i32
    %c0_i32_0 = arith.constant 0 : i32
    return %arg0, %c0_i32 : i32, i32
  }
  func.func @transform_5(%arg0: i32, %arg1: i32) -> (i32, i32) {
    %c0_i32 = arith.constant 0 : i32
    %c0_i32_0 = arith.constant 0 : i32
    return %arg0, %c0_i32 : i32, i32
  }
}

module attributes {stable_mosaic.version = 11 : i64} {
  func.func @_item_head_kernel(%arg0: i32, %arg1: memref<8x64xf32, #tpu.memory_space<vmem>>, %arg2: memref<8x192xf32, #tpu.memory_space<vmem>>, %arg3: memref<32x32xf32, #tpu.memory_space<vmem>>, %arg4: memref<1x32xf32, #tpu.memory_space<vmem>>, %arg5: memref<1x32xf32, #tpu.memory_space<vmem>>, %arg6: memref<32x32xf32, #tpu.memory_space<vmem>>, %arg7: memref<1x32xf32, #tpu.memory_space<vmem>>, %arg8: memref<1x32xf32, #tpu.memory_space<vmem>>, %arg9: memref<1x32xf32, #tpu.memory_space<vmem>>, %arg10: memref<8x32xf32, #tpu.memory_space<vmem>>) attributes {dimension_semantics = [#tpu.dimension_semantics<parallel>], iteration_bounds = array<i64: 1>, scalar_prefetch = 0 : i64, scratch_operands = 0 : i64, tpu.core_type = #tpu.core_type<tc>, window_params = [{transform_indices = @transform_0, window_bounds = array<i64: 8, 64>}, {transform_indices = @transform_1, window_bounds = array<i64: 8, 192>}, {pipeline_mode = #tpu.pipeline_mode<synchronous>, transform_indices = @transform_2, window_bounds = array<i64: 32, 32>}, {pipeline_mode = #tpu.pipeline_mode<synchronous>, transform_indices = @transform_3, window_bounds = array<i64: 1, 32>}, {pipeline_mode = #tpu.pipeline_mode<synchronous>, transform_indices = @transform_4, window_bounds = array<i64: 1, 32>}, {pipeline_mode = #tpu.pipeline_mode<synchronous>, transform_indices = @transform_5, window_bounds = array<i64: 32, 32>}, {pipeline_mode = #tpu.pipeline_mode<synchronous>, transform_indices = @transform_6, window_bounds = array<i64: 1, 32>}, {pipeline_mode = #tpu.pipeline_mode<synchronous>, transform_indices = @transform_7, window_bounds = array<i64: 1, 32>}, {pipeline_mode = #tpu.pipeline_mode<synchronous>, transform_indices = @transform_8, window_bounds = array<i64: 1, 32>}, {transform_indices = @transform_9, window_bounds = array<i64: 8, 32>}]} {
    %c0 = arith.constant 0 : index
    %c0_0 = arith.constant 0 : index
    %0 = vector.load %arg1[%c0, %c0_0] : memref<8x64xf32, #tpu.memory_space<vmem>>, vector<8x64xf32>
    %cst = arith.constant 0.333333343 : f32
    %1 = vector.broadcast %cst : f32 to vector<8x64xf32>
    %2 = arith.mulf %0, %1 : vector<8x64xf32>
    %3 = vector.extract_strided_slice %2 {offsets = [0, 0], sizes = [8, 32], strides = [1, 1]} : vector<8x64xf32> to vector<8x32xf32>
    %4 = vector.extract_strided_slice %2 {offsets = [0, 32], sizes = [8, 32], strides = [1, 1]} : vector<8x64xf32> to vector<8x32xf32>
    %c0_1 = arith.constant 0 : index
    %c0_2 = arith.constant 0 : index
    %5 = vector.load %arg3[%c0_1, %c0_2] : memref<32x32xf32, #tpu.memory_space<vmem>>, vector<32x32xf32>
    %c0_3 = arith.constant 0 : index
    %c0_4 = arith.constant 0 : index
    %6 = vector.load %arg4[%c0_3, %c0_4] : memref<1x32xf32, #tpu.memory_space<vmem>>, vector<1x32xf32>
    %c0_5 = arith.constant 0 : index
    %c0_6 = arith.constant 0 : index
    %7 = vector.load %arg5[%c0_5, %c0_6] : memref<1x32xf32, #tpu.memory_space<vmem>>, vector<1x32xf32>
    %8 = tpu.concatenate %4, %3 in 0 : vector<8x32xf32>, vector<8x32xf32> -> vector<16x32xf32>
    %9 = arith.truncf %8 : vector<16x32xf32> to vector<16x32xbf16>
    %10 = arith.truncf %5 : vector<32x32xf32> to vector<32x32xbf16>
    %cst_7 = arith.constant dense<0.000000e+00> : vector<16x32xf32>
    %11 = tpu.matmul %9, %10, %cst_7 {dimension_numbers = #tpu.dot_dimension_numbers<[1], [0], [0], [1], [0, 0, 1, 1], [], []>} : vector<16x32xbf16>, vector<32x32xbf16>, vector<16x32xf32> -> vector<16x32xf32>
    %12 = vector.broadcast %6 : vector<1x32xf32> to vector<16x32xf32>
    %13 = arith.addf %11, %12 : vector<16x32xf32>
    %14 = math.tanh %13 : vector<16x32xf32>
    %15 = vector.broadcast %7 : vector<1x32xf32> to vector<16x32xf32>
    %16 = arith.mulf %14, %15 : vector<16x32xf32>
    %cst_8 = arith.constant dense<0.000000e+00> : vector<16xf32>
    %17 = vector.multi_reduction <add>, %16, %cst_8 [1] : vector<16x32xf32> to vector<16xf32>
    %18 = vector.shape_cast %17 : vector<16xf32> to vector<16x1xf32>
    %19 = vector.extract_strided_slice %18 {offsets = [0, 0], sizes = [8, 1], strides = [1, 1]} : vector<16x1xf32> to vector<8x1xf32>
    %20 = vector.extract_strided_slice %18 {offsets = [8, 0], sizes = [8, 1], strides = [1, 1]} : vector<16x1xf32> to vector<8x1xf32>
    %21 = arith.subf %19, %20 : vector<8x1xf32>
    %22 = arith.negf %21 : vector<8x1xf32>
    %23 = math.exp %22 : vector<8x1xf32>
    %cst_9 = arith.constant 1.000000e+00 : f32
    %24 = vector.broadcast %cst_9 : f32 to vector<8x1xf32>
    %25 = arith.addf %24, %23 : vector<8x1xf32>
    %26 = arith.divf %24, %25 : vector<8x1xf32>
    %27 = vector.broadcast %26 : vector<8x1xf32> to vector<8x32xf32>
    %28 = arith.mulf %27, %4 : vector<8x32xf32>
    %cst_10 = arith.constant 1.000000e+00 : f32
    %29 = vector.broadcast %cst_10 : f32 to vector<8x1xf32>
    %30 = arith.subf %29, %26 : vector<8x1xf32>
    %31 = vector.broadcast %30 : vector<8x1xf32> to vector<8x32xf32>
    %32 = arith.mulf %31, %3 : vector<8x32xf32>
    %33 = arith.addf %28, %32 : vector<8x32xf32>
    %c0_11 = arith.constant 0 : index
    %c0_12 = arith.constant 0 : index
    %34 = vector.load %arg6[%c0_11, %c0_12] : memref<32x32xf32, #tpu.memory_space<vmem>>, vector<32x32xf32>
    %c0_13 = arith.constant 0 : index
    %c0_14 = arith.constant 0 : index
    %35 = vector.load %arg7[%c0_13, %c0_14] : memref<1x32xf32, #tpu.memory_space<vmem>>, vector<1x32xf32>
    %c0_15 = arith.constant 0 : index
    %c0_16 = arith.constant 0 : index
    %36 = vector.load %arg8[%c0_15, %c0_16] : memref<1x32xf32, #tpu.memory_space<vmem>>, vector<1x32xf32>
    %c0_17 = arith.constant 0 : index
    %c0_18 = arith.constant 0 : index
    %37 = vector.load %arg9[%c0_17, %c0_18] : memref<1x32xf32, #tpu.memory_space<vmem>>, vector<1x32xf32>
    %38 = arith.truncf %33 : vector<8x32xf32> to vector<8x32xbf16>
    %39 = arith.truncf %34 : vector<32x32xf32> to vector<32x32xbf16>
    %cst_19 = arith.constant dense<0.000000e+00> : vector<8x32xf32>
    %40 = tpu.matmul %38, %39, %cst_19 {dimension_numbers = #tpu.dot_dimension_numbers<[1], [0], [0], [1], [0, 0, 1, 1], [], []>} : vector<8x32xbf16>, vector<32x32xbf16>, vector<8x32xf32> -> vector<8x32xf32>
    %41 = vector.broadcast %35 : vector<1x32xf32> to vector<8x32xf32>
    %42 = arith.addf %40, %41 : vector<8x32xf32>
    %cst_20 = arith.constant 0.000000e+00 : f32
    %43 = vector.broadcast %cst_20 : f32 to vector<8x32xf32>
    %44 = arith.maximumf %42, %43 : vector<8x32xf32>
    %cst_21 = arith.constant dense<0.000000e+00> : vector<8xf32>
    %45 = vector.multi_reduction <add>, %44, %cst_21 [1] : vector<8x32xf32> to vector<8xf32>
    %46 = vector.shape_cast %45 : vector<8xf32> to vector<8x1xf32>
    %cst_22 = arith.constant 3.200000e+01 : f32
    %47 = vector.broadcast %cst_22 : f32 to vector<8x1xf32>
    %48 = arith.divf %46, %47 : vector<8x1xf32>
    %49 = vector.broadcast %48 : vector<8x1xf32> to vector<8x32xf32>
    %50 = arith.subf %44, %49 : vector<8x32xf32>
    %51 = arith.mulf %50, %50 : vector<8x32xf32>
    %cst_23 = arith.constant dense<0.000000e+00> : vector<8xf32>
    %52 = vector.multi_reduction <add>, %51, %cst_23 [1] : vector<8x32xf32> to vector<8xf32>
    %53 = vector.shape_cast %52 : vector<8xf32> to vector<8x1xf32>
    %cst_24 = arith.constant 3.200000e+01 : f32
    %54 = vector.broadcast %cst_24 : f32 to vector<8x1xf32>
    %55 = arith.divf %53, %54 : vector<8x1xf32>
    %56 = vector.broadcast %48 : vector<8x1xf32> to vector<8x32xf32>
    %57 = arith.subf %44, %56 : vector<8x32xf32>
    %cst_25 = arith.constant 9.99999997E-7 : f32
    %58 = vector.broadcast %cst_25 : f32 to vector<8x1xf32>
    %59 = arith.addf %55, %58 : vector<8x1xf32>
    %60 = math.rsqrt %59 : vector<8x1xf32>
    %61 = vector.broadcast %60 : vector<8x1xf32> to vector<8x32xf32>
    %62 = arith.mulf %57, %61 : vector<8x32xf32>
    %63 = vector.broadcast %36 : vector<1x32xf32> to vector<8x32xf32>
    %64 = arith.mulf %62, %63 : vector<8x32xf32>
    %65 = vector.broadcast %37 : vector<1x32xf32> to vector<8x32xf32>
    %66 = arith.addf %64, %65 : vector<8x32xf32>
    %c0_26 = arith.constant 0 : index
    %c160 = arith.constant 160 : index
    %67 = vector.load %arg2[%c0_26, %c160] : memref<8x192xf32, #tpu.memory_space<vmem>>, vector<8x32xf32>
    %68 = arith.addf %66, %67 : vector<8x32xf32>
    %c0_27 = arith.constant 0 : index
    %c0_28 = arith.constant 0 : index
    %69 = vector.load %arg10[%c0_27, %c0_28] : memref<8x32xf32, #tpu.memory_space<vmem>>, vector<8x32xf32>
    tpu.vector_store %arg10[%c0_27, %c0_28], %68 {strides = array<i32>} : memref<8x32xf32, #tpu.memory_space<vmem>>, vector<8x32xf32>,
    return
  }
  func.func @transform_0(%arg0: i32) -> (i32, i32) {
    %c1_i32 = arith.constant 1 : i32
    %0 = arith.addi %arg0, %c1_i32 : i32
    %c0_i32 = arith.constant 0 : i32
    %c0_i32_0 = arith.constant 0 : i32
    return %0, %c0_i32 : i32, i32
  }
  func.func @transform_1(%arg0: i32) -> (i32, i32) {
    %c0_i32 = arith.constant 0 : i32
    %c0_i32_0 = arith.constant 0 : i32
    return %arg0, %c0_i32 : i32, i32
  }
  func.func @transform_2(%arg0: i32) -> (i32, i32) {
    %c0_i32 = arith.constant 0 : i32
    %c0_i32_0 = arith.constant 0 : i32
    %c0_i32_1 = arith.constant 0 : i32
    return %c0_i32, %c0_i32_0 : i32, i32
  }
  func.func @transform_3(%arg0: i32) -> (i32, i32) {
    %c0_i32 = arith.constant 0 : i32
    %c0_i32_0 = arith.constant 0 : i32
    %c0_i32_1 = arith.constant 0 : i32
    return %c0_i32, %c0_i32_0 : i32, i32
  }
  func.func @transform_4(%arg0: i32) -> (i32, i32) {
    %c0_i32 = arith.constant 0 : i32
    %c0_i32_0 = arith.constant 0 : i32
    %c0_i32_1 = arith.constant 0 : i32
    return %c0_i32, %c0_i32_0 : i32, i32
  }
  func.func @transform_5(%arg0: i32) -> (i32, i32) {
    %c0_i32 = arith.constant 0 : i32
    %c0_i32_0 = arith.constant 0 : i32
    %c0_i32_1 = arith.constant 0 : i32
    return %c0_i32, %c0_i32_0 : i32, i32
  }
  func.func @transform_6(%arg0: i32) -> (i32, i32) {
    %c0_i32 = arith.constant 0 : i32
    %c0_i32_0 = arith.constant 0 : i32
    %c0_i32_1 = arith.constant 0 : i32
    return %c0_i32, %c0_i32_0 : i32, i32
  }
  func.func @transform_7(%arg0: i32) -> (i32, i32) {
    %c0_i32 = arith.constant 0 : i32
    %c0_i32_0 = arith.constant 0 : i32
    %c0_i32_1 = arith.constant 0 : i32
    return %c0_i32, %c0_i32_0 : i32, i32
  }
  func.func @transform_8(%arg0: i32) -> (i32, i32) {
    %c0_i32 = arith.constant 0 : i32
    %c0_i32_0 = arith.constant 0 : i32
    %c0_i32_1 = arith.constant 0 : i32
    return %c0_i32, %c0_i32_0 : i32, i32
  }
  func.func @transform_9(%arg0: i32) -> (i32, i32) {
    %c0_i32 = arith.constant 0 : i32
    %c0_i32_0 = arith.constant 0 : i32
    return %arg0, %c0_i32 : i32, i32
  }
}

module attributes {stable_mosaic.version = 11 : i64} {
  func.func @_user_head_kernel(%arg0: i32, %arg1: memref<8x64xf32, #tpu.memory_space<vmem>>, %arg2: memref<32x32xf32, #tpu.memory_space<vmem>>, %arg3: memref<1x32xf32, #tpu.memory_space<vmem>>, %arg4: memref<1x32xf32, #tpu.memory_space<vmem>>, %arg5: memref<8x32xf32, #tpu.memory_space<vmem>>) attributes {dimension_semantics = [#tpu.dimension_semantics<parallel>], iteration_bounds = array<i64: 1>, scalar_prefetch = 0 : i64, scratch_operands = 0 : i64, tpu.core_type = #tpu.core_type<tc>, window_params = [{transform_indices = @transform_0, window_bounds = array<i64: 8, 64>}, {pipeline_mode = #tpu.pipeline_mode<synchronous>, transform_indices = @transform_1, window_bounds = array<i64: 32, 32>}, {pipeline_mode = #tpu.pipeline_mode<synchronous>, transform_indices = @transform_2, window_bounds = array<i64: 1, 32>}, {pipeline_mode = #tpu.pipeline_mode<synchronous>, transform_indices = @transform_3, window_bounds = array<i64: 1, 32>}, {transform_indices = @transform_4, window_bounds = array<i64: 8, 32>}]} {
    %c0 = arith.constant 0 : index
    %c0_0 = arith.constant 0 : index
    %0 = vector.load %arg1[%c0, %c0_0] : memref<8x64xf32, #tpu.memory_space<vmem>>, vector<8x64xf32>
    %cst = arith.constant 0.333333343 : f32
    %1 = vector.broadcast %cst : f32 to vector<8x64xf32>
    %2 = arith.mulf %0, %1 : vector<8x64xf32>
    %3 = vector.extract_strided_slice %2 {offsets = [0, 0], sizes = [8, 32], strides = [1, 1]} : vector<8x64xf32> to vector<8x32xf32>
    %4 = vector.extract_strided_slice %2 {offsets = [0, 32], sizes = [8, 32], strides = [1, 1]} : vector<8x64xf32> to vector<8x32xf32>
    %c0_1 = arith.constant 0 : index
    %c0_2 = arith.constant 0 : index
    %5 = vector.load %arg2[%c0_1, %c0_2] : memref<32x32xf32, #tpu.memory_space<vmem>>, vector<32x32xf32>
    %c0_3 = arith.constant 0 : index
    %c0_4 = arith.constant 0 : index
    %6 = vector.load %arg3[%c0_3, %c0_4] : memref<1x32xf32, #tpu.memory_space<vmem>>, vector<1x32xf32>
    %c0_5 = arith.constant 0 : index
    %c0_6 = arith.constant 0 : index
    %7 = vector.load %arg4[%c0_5, %c0_6] : memref<1x32xf32, #tpu.memory_space<vmem>>, vector<1x32xf32>
    %8 = tpu.concatenate %4, %3 in 0 : vector<8x32xf32>, vector<8x32xf32> -> vector<16x32xf32>
    %9 = arith.truncf %8 : vector<16x32xf32> to vector<16x32xbf16>
    %10 = arith.truncf %5 : vector<32x32xf32> to vector<32x32xbf16>
    %cst_7 = arith.constant dense<0.000000e+00> : vector<16x32xf32>
    %11 = tpu.matmul %9, %10, %cst_7 {dimension_numbers = #tpu.dot_dimension_numbers<[1], [0], [0], [1], [0, 0, 1, 1], [], []>} : vector<16x32xbf16>, vector<32x32xbf16>, vector<16x32xf32> -> vector<16x32xf32>
    %12 = vector.broadcast %6 : vector<1x32xf32> to vector<16x32xf32>
    %13 = arith.addf %11, %12 : vector<16x32xf32>
    %14 = math.tanh %13 : vector<16x32xf32>
    %15 = vector.broadcast %7 : vector<1x32xf32> to vector<16x32xf32>
    %16 = arith.mulf %14, %15 : vector<16x32xf32>
    %cst_8 = arith.constant dense<0.000000e+00> : vector<16xf32>
    %17 = vector.multi_reduction <add>, %16, %cst_8 [1] : vector<16x32xf32> to vector<16xf32>
    %18 = vector.shape_cast %17 : vector<16xf32> to vector<16x1xf32>
    %19 = vector.extract_strided_slice %18 {offsets = [0, 0], sizes = [8, 1], strides = [1, 1]} : vector<16x1xf32> to vector<8x1xf32>
    %20 = vector.extract_strided_slice %18 {offsets = [8, 0], sizes = [8, 1], strides = [1, 1]} : vector<16x1xf32> to vector<8x1xf32>
    %21 = arith.subf %19, %20 : vector<8x1xf32>
    %22 = arith.negf %21 : vector<8x1xf32>
    %23 = math.exp %22 : vector<8x1xf32>
    %cst_9 = arith.constant 1.000000e+00 : f32
    %24 = vector.broadcast %cst_9 : f32 to vector<8x1xf32>
    %25 = arith.addf %24, %23 : vector<8x1xf32>
    %26 = arith.divf %24, %25 : vector<8x1xf32>
    %27 = vector.broadcast %26 : vector<8x1xf32> to vector<8x32xf32>
    %28 = arith.mulf %27, %4 : vector<8x32xf32>
    %cst_10 = arith.constant 1.000000e+00 : f32
    %29 = vector.broadcast %cst_10 : f32 to vector<8x1xf32>
    %30 = arith.subf %29, %26 : vector<8x1xf32>
    %31 = vector.broadcast %30 : vector<8x1xf32> to vector<8x32xf32>
    %32 = arith.mulf %31, %3 : vector<8x32xf32>
    %33 = arith.addf %28, %32 : vector<8x32xf32>
    %c0_11 = arith.constant 0 : index
    %c0_12 = arith.constant 0 : index
    %34 = vector.load %arg5[%c0_11, %c0_12] : memref<8x32xf32, #tpu.memory_space<vmem>>, vector<8x32xf32>
    tpu.vector_store %arg5[%c0_11, %c0_12], %33 {strides = array<i32>} : memref<8x32xf32, #tpu.memory_space<vmem>>, vector<8x32xf32>,
    return
  }
  func.func @transform_0(%arg0: i32) -> (i32, i32) {
    %c0_i32 = arith.constant 0 : i32
    %c0_i32_0 = arith.constant 0 : i32
    return %arg0, %c0_i32 : i32, i32
  }
  func.func @transform_1(%arg0: i32) -> (i32, i32) {
    %c0_i32 = arith.constant 0 : i32
    %c0_i32_0 = arith.constant 0 : i32
    %c0_i32_1 = arith.constant 0 : i32
    return %c0_i32, %c0_i32_0 : i32, i32
  }
  func.func @transform_2(%arg0: i32) -> (i32, i32) {
    %c0_i32 = arith.constant 0 : i32
    %c0_i32_0 = arith.constant 0 : i32
    %c0_i32_1 = arith.constant 0 : i32
    return %c0_i32, %c0_i32_0 : i32, i32
  }
  func.func @transform_3(%arg0: i32) -> (i32, i32) {
    %c0_i32 = arith.constant 0 : i32
    %c0_i32_0 = arith.constant 0 : i32
    %c0_i32_1 = arith.constant 0 : i32
    return %c0_i32, %c0_i32_0 : i32, i32
  }
  func.func @transform_4(%arg0: i32) -> (i32, i32) {
    %c0_i32 = arith.constant 0 : i32
    %c0_i32_0 = arith.constant 0 : i32
    return %arg0, %c0_i32 : i32, i32
  }
}

</mosaic_0001>

<llo_original>
// kernel: midgcn_forward.7
$region0: #{midgcn_forward.7}
  #allocation0 [shape = 'u32[]', space=smem, size = 0x4, offset = 0x4, fixed_abs, tag = 'smem constant byte address 0x4 - core index']
  #allocation1 [shape = 'u32[72,128]{1,0:T(1,128)}', space=vmem, size = 0x9000, scoped, tag = 'internal scratch']
  %s0 = inlined_call_operand.hbm [shape: f32[8,32], index: 0, kind: input, shape index: {}]
  %s1 = inlined_call_operand.hbm [shape: f32[8,32], index: 1, kind: input, shape index: {}]
  %s2 = inlined_call_operand.vmem [shape: bf16[8,64], index: 2, kind: output, shape index: {}]
  %s3 = sld [smem:[#allocation0]]
  $region26: #{midgcn_forward.7} parent=0
    _
  %s5 = ssub.s32 1, %s3
  %s6 = scalar_select 0, %s5, %s3
  $region1: #{midgcn_forward.7} parent=0
    #allocation2 [shape = 'u8[4096]{0}', space=vmem, size = 0x1000, scoped, tag = 'input window, operand 0, single buffered']
    #allocation3 [shape = 's32[1]{0}', space=sflag, size = 0x4, scoped, tag = 'scoped memory for midgcn_forward.7']
    #allocation4 [shape = 'u8[4096]{0}', space=vmem, size = 0x1000, scoped, tag = 'input window, operand 1, single buffered']
    #allocation5 [shape = 's32[1]{0}', space=sflag, size = 0x4, scoped, tag = 'scoped memory for midgcn_forward.7']
    %7 = vsyncpa [#allocation3], 0
    %8 = vsyncpa [#allocation5], 0
    // Predicated region
    $region2: #{midgcn_forward.7} parent=1 // pred_check
      _
    $region3: #{midgcn_forward.7} parent=1 // pred_check_branch
      %10 = sbr.rel (0) target = $region5
    $region4: #{midgcn_forward.7} parent=1 // pred_region
      %12 = vsyncadd [#allocation3], 0
      %s14 = sshll.u32 %s0, 4
      %s15 = int_to_ptr.hbm [resolvable:$true] %s14
      %s16 = sshll.u32 [#allocation2], 4
      %s17 = int_to_ptr.vmem [resolvable:$true] %s16
      %19 = dma.hbm_to_vmem [thread:$0]  %s15, 128, %s17, [#allocation3]
    $region5: #{midgcn_forward.7} parent=1 // pred_fallthru
      _
    // Predicated region
    $region6: #{midgcn_forward.7} parent=1 // pred_check
      _
    $region7: #{midgcn_forward.7} parent=1 // pred_check_branch
      %21 = sbr.rel (0) target = $region9
    $region8: #{midgcn_forward.7} parent=1 // pred_region
      %23 = vsyncadd [#allocation5], 0
      %s25 = sshll.u32 %s1, 4
      %s26 = int_to_ptr.hbm [resolvable:$true] %s25
      %s27 = sshll.u32 [#allocation4], 4
      %s28 = int_to_ptr.vmem [resolvable:$true] %s27
      %30 = dma.hbm_to_vmem [thread:$0]  %s26, 128, %s28, [#allocation5]
    $region9: #{midgcn_forward.7} parent=1 // pred_fallthru
      _
    // Predicated region
    $region10: #{midgcn_forward.7} parent=1 // pred_check
      _
    $region11: #{midgcn_forward.7} parent=1 // pred_check_branch
      %32 = sbr.rel (0) target = $region13
    $region12: #{midgcn_forward.7} parent=1 // pred_region
      %34 = dma.done [#allocation3], 128
    $region13: #{midgcn_forward.7} parent=1 // pred_fallthru
      _
    // Predicated region
    $region14: #{midgcn_forward.7} parent=1 // pred_check
      _
    $region15: #{midgcn_forward.7} parent=1 // pred_check_branch
      %36 = sbr.rel (0) target = $region17
    $region16: #{midgcn_forward.7} parent=1 // pred_region
      %38 = dma.done [#allocation5], 128
    $region17: #{midgcn_forward.7} parent=1 // pred_fallthru
      _
    %v39 = vld [vmem:[#allocation2] sm:$0xff]
    %v40 = vmul.f32 %v39, %v39
    %vm41 = vcmask 261120
    %v42 = vsel %vm41, %v40, 0.0
    %43 = vadd.xlane.f32.xlu0 %v42
    %v44 = vpop.xlane.xlu0 %43
    %v45 = vmax.f32 %v44, 1e-24
    %v46 = vrsqrt.pop %v45
    %v47 = vmul.f32 %v46, %v45
    %v48 = vmul.f32 %v47, %v46
    %v49 = vmul.f32 0.5, %v48
    %v50 = vsub.f32 1.5, %v49
    %v51 = vmul.f32 %v46, %v50
    %vm52 = vweird.f32 %v45
    %vm53 = vweird.f32 %v46
    %vm54 = vmor %vm52, %vm53
    %v55 = vsel %vm54, %v46, %v51
    %v56 = vmul.f32 %v39, %v55
    %v57 = vld [vmem:[#allocation4] sm:$0xff]
    %v58 = vmul.f32 %v57, %v57
    %v59 = vsel %vm41, %v58, 0.0
    %60 = vadd.xlane.f32.xlu0 %v59
    %v61 = vpop.xlane.xlu0 %60
    %v62 = vmax.f32 %v61, 1e-24
    %v63 = vrsqrt.pop %v62
    %v64 = vmul.f32 %v63, %v62
    %v65 = vmul.f32 %v64, %v63
    %v66 = vmul.f32 0.5, %v65
    %v67 = vsub.f32 1.5, %v66
    %v68 = vmul.f32 %v63, %v67
    %vm69 = vweird.f32 %v62
    %vm70 = vweird.f32 %v63
    %vm71 = vmor %vm69, %vm70
    %v72 = vsel %vm71, %v63, %v68
    %v73 = vmul.f32 %v57, %v72
    %75 = vrot.lane.b32.xlu0 %v73, 32
    %v76 = vpop.permute.xlu0 %75
    %v78 = vsel %vm41, %v56, %v76
    %v79 = vpack.c.bf16 %v78, %v78
    %vm80 = vcmask 519168
    %81 = vst.msk [vmem:[%s2] sm:$0xf] %vm80, %v79
    // Predicated region
    $region18: #{midgcn_forward.7} parent=1 // pred_check
      _
    $region19: #{midgcn_forward.7} parent=1 // pred_check_branch
      %83 = sbr.rel (0) target = $region21
    $region20: #{midgcn_forward.7} parent=1 // pred_region
      _
    $region21: #{midgcn_forward.7} parent=1 // pred_fallthru
      _
    // Predicated region
    $region22: #{midgcn_forward.7} parent=1 // pred_check
      _
    $region23: #{midgcn_forward.7} parent=1 // pred_check_branch
      %85 = sbr.rel (0) target = $region25
    $region24: #{midgcn_forward.7} parent=1 // pred_region
      _
    $region25: #{midgcn_forward.7} parent=1 // pred_fallthru
      _
    %86 = vsyncpa [#allocation3], 1
    %87 = vsyncpa [#allocation5], 1

// kernel: midgcn_forward.8
$region0: #{midgcn_forward.8}
  #allocation0 [shape = 'u32[]', space=smem, size = 0x4, offset = 0x4, fixed_abs, tag = 'smem constant byte address 0x4 - core index']
  #allocation1 [shape = 'u32[72,128]{1,0:T(1,128)}', space=vmem, size = 0x9000, scoped, tag = 'internal scratch']
  %s0 = inlined_call_operand.vmem [shape: bf16[16,16], index: 0, kind: input, shape index: {}]
  %s1 = inlined_call_operand.vmem [shape: bf16[16,64], index: 1, kind: input, shape index: {}]
  %s2 = inlined_call_operand.vmem [shape: f32[16,64], index: 2, kind: input, shape index: {}]
  %s3 = inlined_call_operand.vmem [shape: f32[16,64], index: 3, kind: input, shape index: {}, may-alias: {3,5}]
  %s4 = inlined_call_operand.vmem [shape: bf16[16,64], index: 4, kind: output, shape index: {0}]
  %s5 = inlined_call_operand.vmem [shape: f32[16,64], index: 5, kind: output, shape index: {1}, may-alias: {3,5}]
  %6 = xla_tuple %s4, %s5
  %s7 = sld [smem:[#allocation0]]
  $region42: #{midgcn_forward.8} parent=0
    _
  %s9 = ssub.s32 1, %s7
  %s10 = scalar_select 0, %s9, %s7
  // Predicated region
  $region2: #{midgcn_forward.8} parent=0 // pred_check
    _
  $region3: #{midgcn_forward.8} parent=0 // pred_check_branch
    %12 = sbr.rel (0) target = $region5
  $region4: #{midgcn_forward.8} parent=0 // pred_region
    _
  $region5: #{midgcn_forward.8} parent=0 // pred_fallthru
    _
  // Predicated region
  $region6: #{midgcn_forward.8} parent=0 // pred_check
    _
  $region7: #{midgcn_forward.8} parent=0 // pred_check_branch
    %14 = sbr.rel (0) target = $region9
  $region8: #{midgcn_forward.8} parent=0 // pred_region
    _
  $region9: #{midgcn_forward.8} parent=0 // pred_fallthru
    _
  // Predicated region
  $region10: #{midgcn_forward.8} parent=0 // pred_check
    _
  $region11: #{midgcn_forward.8} parent=0 // pred_check_branch
    %16 = sbr.rel (0) target = $region13
  $region12: #{midgcn_forward.8} parent=0 // pred_region
    _
  $region13: #{midgcn_forward.8} parent=0 // pred_fallthru
    _
  // Predicated region
  $region14: #{midgcn_forward.8} parent=0 // pred_check
    _
  $region15: #{midgcn_forward.8} parent=0 // pred_check_branch
    %18 = sbr.rel (0) target = $region17
  $region16: #{midgcn_forward.8} parent=0 // pred_region
    _
  $region17: #{midgcn_forward.8} parent=0 // pred_fallthru
    _
  %p20 = scmp.eq.s32.totalorder 0, 0
  // Predicated region
  $region18: #{midgcn_forward.8} parent=0 // pred_check
    %p21 = pneg %p20
  $region19: #{midgcn_forward.8} parent=0 // pred_check_branch
    %23 = sbr.rel (%p21) target = $region21
  $region20: #{midgcn_forward.8} parent=0 // pred_region
    %v24 = vld [vmem:[%s3] sm:$0xff]
    %v25 = vld [vmem:[%s3 + $0x8] sm:$0xff]
    %v26 = vld [vmem:[%s2] sm:$0xff]
    %v27 = vld [vmem:[%s2 + $0x8] sm:$0xff]
    %v28 = vmul.f32 %v26, 0.5
    %v29 = vmul.f32 %v27, 0.5
    %v30 = vadd.f32 %v24, %v28
    %v31 = vadd.f32 %v25, %v29
    %vm32 = vcmask 523264
    %33 = vst.msk [vmem:[%s5] sm:$0xff] %vm32, %v30
    %34 = vst.msk [vmem:[%s5 + $0x8] sm:$0xff] %vm32, %v31
  $region21: #{midgcn_forward.8} parent=0 // pred_fallthru
    _
  %s35 = smul.u32 0, 16
  %v36 = vld [vmem:[%s5] sm:$0xff]
  %v37 = vld [vmem:[%s5 + $0x8] sm:$0xff]
  %v38 = vld [vmem:[%s0] sm:$0xf]
  %v39 = vld [vmem:[%s0 + $0x4] sm:$0xf]
  %s40 = sshra.s32 %s35, 3
  %s41 = sand.u32 %s35, 7
  %s42 = smul.addr %s40, 4
  %s43 = scalar_lea.vmem %s1, %s42
  %v44 = vld [vmem:[%s43] sm:$0xf]
  %v45 = vld [vmem:[%s43 + $0x4] sm:$0xf]
  %v48 = vunpack.c.l.b16 %v38
  %v49 = vunpack.c.l.b16 %v39
  %v50 = vpack.c.b16 %v49, %v48
  %v53 = vunpack.c.l.b16 %v44
  %v54 = vunpack.c.l.b16 %v45
  %v55 = vpack.c.b16 %v54, %v53
  %vm57 = vcmask 130048
  %v59 = vsel %vm57, %v50, 0
  %61 = vmatpush.bf16.msra.mxu0 0
  %62 = vmatpush.bf16.msra.mxu0 0
  %63 = vmatpush.bf16.msra.mxu0 0
  %64 = vmatpush.bf16.msra.mxu0 0
  %65 = vmatpush.bf16.msra.mxu0 0
  %66 = vmatpush.bf16.msra.mxu0 0
  %67 = vmatpush.bf16.msra.mxu0 0
  %68 = vmatpush.bf16.msra.mxu0 %v55
  %69 = vmatmul.bf16.gmra.mxu0 %v59
  %v70 = vpop.f32.mrf.mxu0
  %v71 = vadd.f32 0.0, %v70
  %v72 = vpop.f32.mrf.mxu0
  %v73 = vadd.f32 0.0, %v72
  %74 = vdwg.mxu0
  %v75 = vadd.f32 %v36, %v71
  %v76 = vadd.f32 %v37, %v73
  %vm77 = vcmask 523264
  %78 = vst.msk [vmem:[%s5] sm:$0xff] %vm77, %v75
  %79 = vst.msk [vmem:[%s5 + $0x8] sm:$0xff] %vm77, %v76
  // Predicated region
  $region22: #{midgcn_forward.8} parent=0 // pred_check
    %p80 = pneg %p20
  $region23: #{midgcn_forward.8} parent=0 // pred_check_branch
    %82 = sbr.rel (%p80) target = $region25
  $region24: #{midgcn_forward.8} parent=0 // pred_region
    %v83 = vld [vmem:[%s5] sm:$0xff]
    %v84 = vld [vmem:[%s5 + $0x8] sm:$0xff]
    %v85 = vld [vmem:[%s3] sm:$0xff]
    %v86 = vld [vmem:[%s3 + $0x8] sm:$0xff]
    %v87 = vsub.f32 %v83, %v85
    %v88 = vsub.f32 %v84, %v86
    %v89 = vpack.c.bf16 %v87, %v87
    %v90 = vpack.c.bf16 %v88, %v88
    %vm91 = vcmask 519168
    %92 = vst.msk [vmem:[%s4] sm:$0xf] %vm91, %v89
    %93 = vst.msk [vmem:[%s4 + $0x4] sm:$0xf] %vm91, %v90
  $region25: #{midgcn_forward.8} parent=0 // pred_fallthru
    _
  // Predicated region
  $region26: #{midgcn_forward.8} parent=0 // pred_check
    _
  $region27: #{midgcn_forward.8} parent=0 // pred_check_branch
    %95 = sbr.rel (0) target = $region29
  $region28: #{midgcn_forward.8} parent=0 // pred_region
    _
  $region29: #{midgcn_forward.8} parent=0 // pred_fallthru
    _
  // Predicated region
  $region30: #{midgcn_forward.8} parent=0 // pred_check
    _
  $region31: #{midgcn_forward.8} parent=0 // pred_check_branch
    %97 = sbr.rel (0) target = $region33
  $region32: #{midgcn_forward.8} parent=0 // pred_region
    _
  $region33: #{midgcn_forward.8} parent=0 // pred_fallthru
    _
  // Predicated region
  $region34: #{midgcn_forward.8} parent=0 // pred_check
    _
  $region35: #{midgcn_forward.8} parent=0 // pred_check_branch
    %99 = sbr.rel (0) target = $region37
  $region36: #{midgcn_forward.8} parent=0 // pred_region
    _
  $region37: #{midgcn_forward.8} parent=0 // pred_fallthru
    _
  // Predicated region
  $region38: #{midgcn_forward.8} parent=0 // pred_check
    _
  $region39: #{midgcn_forward.8} parent=0 // pred_check_branch
    %101 = sbr.rel (0) target = $region41
  $region40: #{midgcn_forward.8} parent=0 // pred_region
    _
  $region41: #{midgcn_forward.8} parent=0 // pred_fallthru
    _

// kernel: midgcn_forward.6
$region0: #{midgcn_forward.6}
  #allocation0 [shape = 'u32[]', space=smem, size = 0x4, offset = 0x4, fixed_abs, tag = 'smem constant byte address 0x4 - core index']
  #allocation1 [shape = 'u32[72,128]{1,0:T(1,128)}', space=vmem, size = 0x9000, scoped, tag = 'internal scratch']
  %s0 = inlined_call_operand.hbm [shape: f32[8,64], index: 0, kind: input, shape index: {}]
  %s1 = inlined_call_operand.hbm [shape: f32[8,48], index: 1, kind: input, shape index: {}]
  %s2 = inlined_call_operand.vmem [shape: f32[8,32], index: 2, kind: input, shape index: {}]
  %s3 = inlined_call_operand.vmem [shape: f32[8,32], index: 3, kind: input, shape index: {}]
  %s4 = inlined_call_operand.vmem [shape: f32[64,32], index: 4, kind: input, shape index: {}]
  %s5 = inlined_call_operand.hbm [shape: f32[1,32], index: 5, kind: input, shape index: {}]
  %s6 = inlined_call_operand.vmem [shape: f32[48,32], index: 6, kind: input, shape index: {}]
  %s7 = inlined_call_operand.hbm [shape: f32[1,32], index: 7, kind: input, shape index: {}]
  %s8 = inlined_call_operand.vmem [shape: f32[32,32], index: 8, kind: input, shape index: {}]
  %s9 = inlined_call_operand.hbm [shape: f32[1,32], index: 9, kind: input, shape index: {}]
  %s10 = inlined_call_operand.hbm [shape: f32[1,32], index: 10, kind: input, shape index: {}]
  %s11 = inlined_call_operand.vmem [shape: f32[32,32], index: 11, kind: input, shape index: {}]
  %s12 = inlined_call_operand.hbm [shape: f32[1,32], index: 12, kind: input, shape index: {}]
  %s13 = inlined_call_operand.hbm [shape: f32[1,32], index: 13, kind: input, shape index: {}]
  %s14 = inlined_call_operand.vmem [shape: f32[32,32], index: 14, kind: input, shape index: {}]
  %s15 = inlined_call_operand.hbm [shape: f32[1,32], index: 15, kind: input, shape index: {}]
  %s16 = inlined_call_operand.hbm [shape: f32[1,32], index: 16, kind: input, shape index: {}]
  %s17 = inlined_call_operand.vmem [shape: f32[32,32], index: 17, kind: input, shape index: {}]
  %s18 = inlined_call_operand.hbm [shape: f32[1,32], index: 18, kind: input, shape index: {}]
  %s19 = inlined_call_operand.hbm [shape: f32[1,32], index: 19, kind: input, shape index: {}]
  %s20 = inlined_call_operand.hbm [shape: f32[1,32], index: 20, kind: input, shape index: {}]
  %s21 = inlined_call_operand.vmem [shape: f32[8,192], index: 21, kind: output, shape index: {0}]
  %s22 = inlined_call_operand.vmem [shape: bf16[8,64], index: 22, kind: output, shape index: {1}]
  %23 = xla_tuple %s21, %s22
  %s24 = sld [smem:[#allocation0]]
  $region154: #{midgcn_forward.6} parent=0
    _
  %s26 = ssub.s32 1, %s24
  %s27 = scalar_select 0, %s26, %s24
  $region1: #{midgcn_forward.6} parent=0
    #allocation2 [shape = 'u8[4096]{0}', space=vmem, size = 0x1000, scoped, tag = 'input window, operand 0, single buffered']
    #allocation3 [shape = 's32[1]{0}', space=sflag, size = 0x4, scoped, tag = 'scoped memory for midgcn_forward.6']
    #allocation4 [shape = 'u8[4096]{0}', space=vmem, size = 0x1000, scoped, tag = 'input window, operand 1, single buffered']
    #allocation5 [shape = 's32[1]{0}', space=sflag, size = 0x4, scoped, tag = 'scoped memory for midgcn_forward.6']
    #allocation6 [shape = 'u8[512]{0}', space=vmem, size = 0x400, scoped, tag = 'input window, operand 5, single buffered']
    #allocation7 [shape = 'u8[512]{0}', space=vmem, size = 0x400, scoped, tag = 'input window, operand 7, single buffered']
    #allocation8 [shape = 's32[1]{0}', space=sflag, size = 0x4, scoped, tag = 'scoped memory for midgcn_forward.6']
    #allocation9 [shape = 'u8[512]{0}', space=vmem, size = 0x400, scoped, tag = 'input window, operand 9, single buffered']
    #allocation10 [shape = 'u8[512]{0}', space=vmem, size = 0x400, scoped, tag = 'input window, operand 10, single buffered']
    #allocation11 [shape = 's32[1]{0}', space=sflag, size = 0x4, scoped, tag = 'scoped memory for midgcn_forward.6']
    #allocation12 [shape = 'u8[512]{0}', space=vmem, size = 0x400, scoped, tag = 'input window, operand 12, single buffered']
    #allocation13 [shape = 'u8[512]{0}', space=vmem, size = 0x400, scoped, tag = 'input window, operand 13, single buffered']
    #allocation14 [shape = 's32[1]{0}', space=sflag, size = 0x4, scoped, tag = 'scoped memory for midgcn_forward.6']
    #allocation15 [shape = 'u8[512]{0}', space=vmem, size = 0x400, scoped, tag = 'input window, operand 15, single buffered']
    #allocation16 [shape = 'u8[512]{0}', space=vmem, size = 0x400, scoped, tag = 'input window, operand 16, single buffered']
    #allocation17 [shape = 's32[1]{0}', space=sflag, size = 0x4, scoped, tag = 'scoped memory for midgcn_forward.6']
    #allocation18 [shape = 'u8[512]{0}', space=vmem, size = 0x400, scoped, tag = 'input window, operand 18, single buffered']
    #allocation19 [shape = 'u8[512]{0}', space=vmem, size = 0x400, scoped, tag = 'input window, operand 19, single buffered']
    #allocation20 [shape = 's32[1]{0}', space=sflag, size = 0x4, scoped, tag = 'scoped memory for midgcn_forward.6']
    #allocation21 [shape = 'u8[512]{0}', space=vmem, size = 0x400, scoped, tag = 'input window, operand 20, single buffered']
    %28 = vsyncpa [#allocation3], 0
    %29 = vsyncpa [#allocation5], 0
    %30 = vsyncpa [#allocation8], 0
    %31 = vsyncpa [#allocation11], 0
    %32 = vsyncpa [#allocation14], 0
    %33 = vsyncpa [#allocation17], 0
    %34 = vsyncpa [#allocation20], 0
    // Predicated region
    $region2: #{midgcn_forward.6} parent=1 // pred_check
      _
    $region3: #{midgcn_forward.6} parent=1 // pred_check_branch
      %36 = sbr.rel (0) target = $region5
    $region4: #{midgcn_forward.6} parent=1 // pred_region
      %38 = vsyncadd [#allocation3], 0
      %s40 = sshll.u32 %s0, 4
      %s41 = int_to_ptr.hbm [resolvable:$true] %s40
      %s42 = sshll.u32 [#allocation2], 4
      %s43 = int_to_ptr.vmem [resolvable:$true] %s42
      %45 = dma.hbm_to_vmem [thread:$0]  %s41, 128, %s43, [#allocation3]
    $region5: #{midgcn_forward.6} parent=1 // pred_fallthru
      _
    // Predicated region
    $region6: #{midgcn_forward.6} parent=1 // pred_check
      _
    $region7: #{midgcn_forward.6} parent=1 // pred_check_branch
      %47 = sbr.rel (0) target = $region9
    $region8: #{midgcn_forward.6} parent=1 // pred_region
      %49 = vsyncadd [#allocation5], 0
      %s51 = sshll.u32 %s1, 4
      %s52 = int_to_ptr.hbm [resolvable:$true] %s51
      %s53 = sshll.u32 [#allocation4], 4
      %s54 = int_to_ptr.vmem [resolvable:$true] %s53
      %56 = dma.hbm_to_vmem [thread:$0]  %s52, 128, %s54, [#allocation5]
    $region9: #{midgcn_forward.6} parent=1 // pred_fallthru
      _
    // Predicated region
    $region10: #{midgcn_forward.6} parent=1 // pred_check
      _
    $region11: #{midgcn_forward.6} parent=1 // pred_check_branch
      %58 = sbr.rel (0) target = $region13
    $region12: #{midgcn_forward.6} parent=1 // pred_region
      _
    $region13: #{midgcn_forward.6} parent=1 // pred_fallthru
      _
    // Predicated region
    $region14: #{midgcn_forward.6} parent=1 // pred_check
      _
    $region15: #{midgcn_forward.6} parent=1 // pred_check_branch
      %60 = sbr.rel (0) target = $region17
    $region16: #{midgcn_forward.6} parent=1 // pred_region
      _
    $region17: #{midgcn_forward.6} parent=1 // pred_fallthru
      _
    // Predicated region
    $region18: #{midgcn_forward.6} parent=1 // pred_check
      _
    $region19: #{midgcn_forward.6} parent=1 // pred_check_branch
      %62 = sbr.rel (0) target = $region21
    $region20: #{midgcn_forward.6} parent=1 // pred_region
      _
    $region21: #{midgcn_forward.6} parent=1 // pred_fallthru
      _
    // Predicated region
    $region22: #{midgcn_forward.6} parent=1 // pred_check
      _
    $region23: #{midgcn_forward.6} parent=1 // pred_check_branch
      %64 = sbr.rel (0) target = $region25
    $region24: #{midgcn_forward.6} parent=1 // pred_region
      %66 = vsyncadd [#allocation5], 0
      %s68 = sshll.u32 %s5, 4
      %s69 = int_to_ptr.hbm [resolvable:$true] %s68
      %s70 = sshll.u32 [#allocation6], 4
      %s71 = int_to_ptr.vmem [resolvable:$true] %s70
      %73 = dma.hbm_to_vmem [thread:$0]  %s69, 16, %s71, [#allocation5]
    $region25: #{midgcn_forward.6} parent=1 // pred_fallthru
      _
    // Predicated region
    $region26: #{midgcn_forward.6} parent=1 // pred_check
      _
    $region27: #{midgcn_forward.6} parent=1 // pred_check_branch
      %75 = sbr.rel (0) target = $region29
    $region28: #{midgcn_forward.6} parent=1 // pred_region
      _
    $region29: #{midgcn_forward.6} parent=1 // pred_fallthru
      _
    // Predicated region
    $region30: #{midgcn_forward.6} parent=1 // pred_check
      _
    $region31: #{midgcn_forward.6} parent=1 // pred_check_branch
      %77 = sbr.rel (0) target = $region33
    $region32: #{midgcn_forward.6} parent=1 // pred_region
      %79 = vsyncadd [#allocation8], 0
      %s81 = sshll.u32 %s7, 4
      %s82 = int_to_ptr.hbm [resolvable:$true] %s81
      %s83 = sshll.u32 [#allocation7], 4
      %s84 = int_to_ptr.vmem [resolvable:$true] %s83
      %86 = dma.hbm_to_vmem [thread:$0]  %s82, 16, %s84, [#allocation8]
    $region33: #{midgcn_forward.6} parent=1 // pred_fallthru
      _
    // Predicated region
    $region34: #{midgcn_forward.6} parent=1 // pred_check
      _
    $region35: #{midgcn_forward.6} parent=1 // pred_check_branch
      %88 = sbr.rel (0) target = $region37
    $region36: #{midgcn_forward.6} parent=1 // pred_region
      _
    $region37: #{midgcn_forward.6} parent=1 // pred_fallthru
      _
    // Predicated region
    $region38: #{midgcn_forward.6} parent=1 // pred_check
      _
    $region39: #{midgcn_forward.6} parent=1 // pred_check_branch
      %90 = sbr.rel (0) target = $region41
    $region40: #{midgcn_forward.6} parent=1 // pred_region
      %92 = vsyncadd [#allocation8], 0
      %s94 = sshll.u32 %s9, 4
      %s95 = int_to_ptr.hbm [resolvable:$true] %s94
      %s96 = sshll.u32 [#allocation9], 4
      %s97 = int_to_ptr.vmem [resolvable:$true] %s96
      %99 = dma.hbm_to_vmem [thread:$0]  %s95, 16, %s97, [#allocation8]
    $region41: #{midgcn_forward.6} parent=1 // pred_fallthru
      _
    // Predicated region
    $region42: #{midgcn_forward.6} parent=1 // pred_check
      _
    $region43: #{midgcn_forward.6} parent=1 // pred_check_branch
      %101 = sbr.rel (0) target = $region45
    $region44: #{midgcn_forward.6} parent=1 // pred_region
      %103 = vsyncadd [#allocation11], 0
      %s105 = sshll.u32 %s10, 4
      %s106 = int_to_ptr.hbm [resolvable:$true] %s105
      %s107 = sshll.u32 [#allocation10], 4
      %s108 = int_to_ptr.vmem [resolvable:$true] %s107
      %110 = dma.hbm_to_vmem [thread:$0]  %s106, 16, %s108, [#allocation11]
    $region45: #{midgcn_forward.6} parent=1 // pred_fallthru
      _
    // Predicated region
    $region46: #{midgcn_forward.6} parent=1 // pred_check
      _
    $region47: #{midgcn_forward.6} parent=1 // pred_check_branch
      %112 = sbr.rel (0) target = $region49
    $region48: #{midgcn_forward.6} parent=1 // pred_region
      _
    $region49: #{midgcn_forward.6} parent=1 // pred_fallthru
      _
    // Predicated region
    $region50: #{midgcn_forward.6} parent=1 // pred_check
      _
    $region51: #{midgcn_forward.6} parent=1 // pred_check_branch
      %114 = sbr.rel (0) target = $region53
    $region52: #{midgcn_forward.6} parent=1 // pred_region
      %116 = vsyncadd [#allocation11], 0
      %s118 = sshll.u32 %s12, 4
      %s119 = int_to_ptr.hbm [resolvable:$true] %s118
      %s120 = sshll.u32 [#allocation12], 4
      %s121 = int_to_ptr.vmem [resolvable:$true] %s120
      %123 = dma.hbm_to_vmem [thread:$0]  %s119, 16, %s121, [#allocation11]
    $region53: #{midgcn_forward.6} parent=1 // pred_fallthru
      _
    // Predicated region
    $region54: #{midgcn_forward.6} parent=1 // pred_check
      _
    $region55: #{midgcn_forward.6} parent=1 // pred_check_branch
      %125 = sbr.rel (0) target = $region57
    $region56: #{midgcn_forward.6} parent=1 // pred_region
      %127 = vsyncadd [#allocation14], 0
      %s129 = sshll.u32 %s13, 4
      %s130 = int_to_ptr.hbm [resolvable:$true] %s129
      %s131 = sshll.u32 [#allocation13], 4
      %s132 = int_to_ptr.vmem [resolvable:$true] %s131
      %134 = dma.hbm_to_vmem [thread:$0]  %s130, 16, %s132, [#allocation14]
    $region57: #{midgcn_forward.6} parent=1 // pred_fallthru
      _
    // Predicated region
    $region58: #{midgcn_forward.6} parent=1 // pred_check
      _
    $region59: #{midgcn_forward.6} parent=1 // pred_check_branch
      %136 = sbr.rel (0) target = $region61
    $region60: #{midgcn_forward.6} parent=1 // pred_region
      _
    $region61: #{midgcn_forward.6} parent=1 // pred_fallthru
      _
    // Predicated region
    $region62: #{midgcn_forward.6} parent=1 // pred_check
      _
    $region63: #{midgcn_forward.6} parent=1 // pred_check_branch
      %138 = sbr.rel (0) target = $region65
    $region64: #{midgcn_forward.6} parent=1 // pred_region
      %140 = vsyncadd [#allocation14], 0
      %s142 = sshll.u32 %s15, 4
      %s143 = int_to_ptr.hbm [resolvable:$true] %s142
      %s144 = sshll.u32 [#allocation15], 4
      %s145 = int_to_ptr.vmem [resolvable:$true] %s144
      %147 = dma.hbm_to_vmem [thread:$0]  %s143, 16, %s145, [#allocation14]
    $region65: #{midgcn_forward.6} parent=1 // pred_fallthru
      _
    // Predicated region
    $region66: #{midgcn_forward.6} parent=1 // pred_check
      _
    $region67: #{midgcn_forward.6} parent=1 // pred_check_branch
      %149 = sbr.rel (0) target = $region69
    $region68: #{midgcn_forward.6} parent=1 // pred_region
      %151 = vsyncadd [#allocation17], 0
      %s153 = sshll.u32 %s16, 4
      %s154 = int_to_ptr.hbm [resolvable:$true] %s153
      %s155 = sshll.u32 [#allocation16], 4
      %s156 = int_to_ptr.vmem [resolvable:$true] %s155
      %158 = dma.hbm_to_vmem [thread:$0]  %s154, 16, %s156, [#allocation17]
    $region69: #{midgcn_forward.6} parent=1 // pred_fallthru
      _
    // Predicated region
    $region70: #{midgcn_forward.6} parent=1 // pred_check
      _
    $region71: #{midgcn_forward.6} parent=1 // pred_check_branch
      %160 = sbr.rel (0) target = $region73
    $region72: #{midgcn_forward.6} parent=1 // pred_region
      _
    $region73: #{midgcn_forward.6} parent=1 // pred_fallthru
      _
    // Predicated region
    $region74: #{midgcn_forward.6} parent=1 // pred_check
      _
    $region75: #{midgcn_forward.6} parent=1 // pred_check_branch
      %162 = sbr.rel (0) target = $region77
    $region76: #{midgcn_forward.6} parent=1 // pred_region
      %164 = vsyncadd [#allocation17], 0
      %s166 = sshll.u32 %s18, 4
      %s167 = int_to_ptr.hbm [resolvable:$true] %s166
      %s168 = sshll.u32 [#allocation18], 4
      %s169 = int_to_ptr.vmem [resolvable:$true] %s168
      %171 = dma.hbm_to_vmem [thread:$0]  %s167, 16, %s169, [#allocation17]
    $region77: #{midgcn_forward.6} parent=1 // pred_fallthru
      _
    // Predicated region
    $region78: #{midgcn_forward.6} parent=1 // pred_check
      _
    $region79: #{midgcn_forward.6} parent=1 // pred_check_branch
      %173 = sbr.rel (0) target = $region81
    $region80: #{midgcn_forward.6} parent=1 // pred_region
      %175 = vsyncadd [#allocation20], 0
      %s177 = sshll.u32 %s19, 4
      %s178 = int_to_ptr.hbm [resolvable:$true] %s177
      %s179 = sshll.u32 [#allocation19], 4
      %s180 = int_to_ptr.vmem [resolvable:$true] %s179
      %182 = dma.hbm_to_vmem [thread:$0]  %s178, 16, %s180, [#allocation20]
    $region81: #{midgcn_forward.6} parent=1 // pred_fallthru
      _
    // Predicated region
    $region82: #{midgcn_forward.6} parent=1 // pred_check
      _
    $region83: #{midgcn_forward.6} parent=1 // pred_check_branch
      %184 = sbr.rel (0) target = $region85
    $region84: #{midgcn_forward.6} parent=1 // pred_region
      %186 = vsyncadd [#allocation20], 0
      %s188 = sshll.u32 %s20, 4
      %s189 = int_to_ptr.hbm [resolvable:$true] %s188
      %s190 = sshll.u32 [#allocation21], 4
      %s191 = int_to_ptr.vmem [resolvable:$true] %s190
      %193 = dma.hbm_to_vmem [thread:$0]  %s189, 16, %s191, [#allocation20]
    $region85: #{midgcn_forward.6} parent=1 // pred_fallthru
      _
    // Predicated region
    $region86: #{midgcn_forward.6} parent=1 // pred_check
      _
    $region87: #{midgcn_forward.6} parent=1 // pred_check_branch
      %195 = sbr.rel (0) target = $region89
    $region88: #{midgcn_forward.6} parent=1 // pred_region
      %197 = dma.done [#allocation3], 128
    $region89: #{midgcn_forward.6} parent=1 // pred_fallthru
      _
    // Predicated region
    $region90: #{midgcn_forward.6} parent=1 // pred_check
      _
    $region91: #{midgcn_forward.6} parent=1 // pred_check_branch
      %199 = sbr.rel (0) target = $region93
    $region92: #{midgcn_forward.6} parent=1 // pred_region
      %201 = dma.done [#allocation5], 128
    $region93: #{midgcn_forward.6} parent=1 // pred_fallthru
      _
    // Predicated region
    $region94: #{midgcn_forward.6} parent=1 // pred_check
      _
    $region95: #{midgcn_forward.6} parent=1 // pred_check_branch
      %203 = sbr.rel (0) target = $region97
    $region96: #{midgcn_forward.6} parent=1 // pred_region
      %205 = dma.done [#allocation5], 16
    $region97: #{midgcn_forward.6} parent=1 // pred_fallthru
      _
    // Predicated region
    $region98: #{midgcn_forward.6} parent=1 // pred_check
      _
    $region99: #{midgcn_forward.6} parent=1 // pred_check_branch
      %207 = sbr.rel (0) target = $region101
    $region100: #{midgcn_forward.6} parent=1 // pred_region
      %209 = dma.done [#allocation8], 16
    $region101: #{midgcn_forward.6} parent=1 // pred_fallthru
      _
    // Predicated region
    $region102: #{midgcn_forward.6} parent=1 // pred_check
      _
    $region103: #{midgcn_forward.6} parent=1 // pred_check_branch
      %211 = sbr.rel (0) target = $region105
    $region104: #{midgcn_forward.6} parent=1 // pred_region
      %213 = dma.done [#allocation8], 16
    $region105: #{midgcn_forward.6} parent=1 // pred_fallthru
      _
    // Predicated region
    $region106: #{midgcn_forward.6} parent=1 // pred_check
      _
    $region107: #{midgcn_forward.6} parent=1 // pred_check_branch
      %215 = sbr.rel (0) target = $region109
    $region108: #{midgcn_forward.6} parent=1 // pred_region
      %217 = dma.done [#allocation11], 16
    $region109: #{midgcn_forward.6} parent=1 // pred_fallthru
      _
    // Predicated region
    $region110: #{midgcn_forward.6} parent=1 // pred_check
      _
    $region111: #{midgcn_forward.6} parent=1 // pred_check_branch
      %219 = sbr.rel (0) target = $region113
    $region112: #{midgcn_forward.6} parent=1 // pred_region
      %221 = dma.done [#allocation11], 16
    $region113: #{midgcn_forward.6} parent=1 // pred_fallthru
      _
    // Predicated region
    $region114: #{midgcn_forward.6} parent=1 // pred_check
      _
    $region115: #{midgcn_forward.6} parent=1 // pred_check_branch
      %223 = sbr.rel (0) target = $region117
    $region116: #{midgcn_forward.6} parent=1 // pred_region
      %225 = dma.done [#allocation14], 16
    $region117: #{midgcn_forward.6} parent=1 // pred_fallthru
      _
    // Predicated region
    $region118: #{midgcn_forward.6} parent=1 // pred_check
      _
    $region119: #{midgcn_forward.6} parent=1 // pred_check_branch
      %227 = sbr.rel (0) target = $region121
    $region120: #{midgcn_forward.6} parent=1 // pred_region
      %229 = dma.done [#allocation14], 16
    $region121: #{midgcn_forward.6} parent=1 // pred_fallthru
      _
    // Predicated region
    $region122: #{midgcn_forward.6} parent=1 // pred_check
      _
    $region123: #{midgcn_forward.6} parent=1 // pred_check_branch
      %231 = sbr.rel (0) target = $region125
    $region124: #{midgcn_forward.6} parent=1 // pred_region
      %233 = dma.done [#allocation17], 16
    $region125: #{midgcn_forward.6} parent=1 // pred_fallthru
      _
    // Predicated region
    $region126: #{midgcn_forward.6} parent=1 // pred_check
      _
    $region127: #{midgcn_forward.6} parent=1 // pred_check_branch
      %235 = sbr.rel (0) target = $region129
    $region128: #{midgcn_forward.6} parent=1 // pred_region
      %237 = dma.done [#allocation17], 16
    $region129: #{midgcn_forward.6} parent=1 // pred_fallthru
      _
    // Predicated region
    $region130: #{midgcn_forward.6} parent=1 // pred_check
      _
    $region131: #{midgcn_forward.6} parent=1 // pred_check_branch
      %239 = sbr.rel (0) target = $region133
    $region132: #{midgcn_forward.6} parent=1 // pred_region
      %241 = dma.done [#allocation20], 16
    $region133: #{midgcn_forward.6} parent=1 // pred_fallthru
      _
    // Predicated region
    $region134: #{midgcn_forward.6} parent=1 // pred_check
      _
    $region135: #{midgcn_forward.6} parent=1 // pred_check_branch
      %243 = sbr.rel (0) target = $region137
    $region136: #{midgcn_forward.6} parent=1 // pred_region
      %245 = dma.done [#allocation20], 16
    $region137: #{midgcn_forward.6} parent=1 // pred_fallthru
      _
    %v247 = vld [vmem:[#allocation2] sm:$0xff]
    %v248 = vld [vmem:[%s4] sm:$0xff]
    %v249 = vld [vmem:[%s4 + $0x8] sm:$0xff]
    %v250 = vld [vmem:[%s4 + $0x10] sm:$0xff]
    %v251 = vld [vmem:[%s4 + $0x18] sm:$0xff]
    %v252 = vld [vmem:[%s4 + $0x20] sm:$0xff]
    %v253 = vld [vmem:[%s4 + $0x28] sm:$0xff]
    %v254 = vld [vmem:[%s4 + $0x30] sm:$0xff]
    %v255 = vld [vmem:[%s4 + $0x38] sm:$0xff]
    %v256 = vpack.c.bf16 %v247, %v247
    %v257 = vpack.c.bf16 %v249, %v248
    %v258 = vpack.c.bf16 %v251, %v250
    %v259 = vpack.c.bf16 %v253, %v252
    %v260 = vpack.c.bf16 %v255, %v254
    %v261 = vld [vmem:[#allocation6] sm:$0x1]
    %v263 = vperm.slane %v261, 0
    %vm265 = vcmask 523264
    %v267 = vsel %vm265, %v256, 0
    %269 = vmatpush.bf16.msra.mxu0 0
    %270 = vmatpush.bf16.msra.mxu0 0
    %271 = vmatpush.bf16.msra.mxu0 0
    %272 = vmatpush.bf16.msra.mxu0 0
    %273 = vmatpush.bf16.msra.mxu0 %v260
    %274 = vmatpush.bf16.msra.mxu0 %v259
    %275 = vmatpush.bf16.msra.mxu0 %v258
    %276 = vmatpush.bf16.msra.mxu0 %v257
    %277 = vmatmul.bf16.gmra.mxu0 %v267
    %v278 = vpop.f32.mrf.mxu0
    %v279 = vadd.f32 %v263, %v278
    %v280 = vpop.f32.mrf.mxu0
    %281 = vdwg.mxu0
    %v282 = vld [vmem:[#allocation4] sm:$0xff]
    %v283 = vld [vmem:[%s6] sm:$0xff]
    %v284 = vld [vmem:[%s6 + $0x8] sm:$0xff]
    %v285 = vld [vmem:[%s6 + $0x10] sm:$0xff]
    %v286 = vld [vmem:[%s6 + $0x18] sm:$0xff]
    %v287 = vld [vmem:[%s6 + $0x20] sm:$0xff]
    %v288 = vld [vmem:[%s6 + $0x28] sm:$0xff]
    %v289 = vpack.c.bf16 %v282, %v282
    %v290 = vpack.c.bf16 %v284, %v283
    %v291 = vpack.c.bf16 %v286, %v285
    %v292 = vpack.c.bf16 %v288, %v287
    %v293 = vld [vmem:[#allocation7] sm:$0x1]
    %v295 = vperm.slane %v293, 0
    %vm297 = vcmask 392192
    %v299 = vsel %vm297, %v289, 0
    %301 = vmatpush.bf16.msra.mxu0 0
    %302 = vmatpush.bf16.msra.mxu0 0
    %303 = vmatpush.bf16.msra.mxu0 0
    %304 = vmatpush.bf16.msra.mxu0 0
    %305 = vmatpush.bf16.msra.mxu0 0
    %306 = vmatpush.bf16.msra.mxu0 %v292
    %307 = vmatpush.bf16.msra.mxu0 %v291
    %308 = vmatpush.bf16.msra.mxu0 %v290
    %309 = vmatmul.bf16.gmra.mxu0 %v299
    %v310 = vpop.f32.mrf.mxu0
    %v311 = vadd.f32 %v295, %v310
    %v312 = vpop.f32.mrf.mxu0
    %313 = vdwg.mxu0
    %v314 = vld [vmem:[%s2] sm:$0xff]
    %v315 = vld [vmem:[%s8] sm:$0xff]
    %v316 = vld [vmem:[%s8 + $0x8] sm:$0xff]
    %v317 = vld [vmem:[%s8 + $0x10] sm:$0xff]
    %v318 = vld [vmem:[%s8 + $0x18] sm:$0xff]
    %v319 = vld [vmem:[#allocation9] sm:$0x1]
    %v320 = vld [vmem:[#allocation10] sm:$0x1]
    %v321 = vpack.c.bf16 %v314, %v279
    %v322 = vpack.c.bf16 %v316, %v315
    %v323 = vpack.c.bf16 %v318, %v317
    %v325 = vperm.slane %v319, 0
    %vm327 = vcmask 261120
    %v329 = vsel %vm327, %v321, 0
    %331 = vmatpush.bf16.msra.mxu0 0
    %332 = vmatpush.bf16.msra.mxu0 0
    %333 = vmatpush.bf16.msra.mxu0 0
    %334 = vmatpush.bf16.msra.mxu0 0
    %335 = vmatpush.bf16.msra.mxu0 0
    %336 = vmatpush.bf16.msra.mxu0 0
    %337 = vmatpush.bf16.msra.mxu0 %v323
    %338 = vmatpush.bf16.msra.mxu0 %v322
    %339 = vmatmul.bf16.gmra.mxu0 %v329
    %v340 = vpop.f32.mrf.mxu0
    %v341 = vadd.f32 %v325, %v340
    %v342 = vpop.f32.mrf.mxu0
    %v343 = vadd.f32 %v325, %v342
    %344 = vdwg.mxu0
    %v345 = vtanh.pop %v341
    %v346 = vtanh.pop %v343
    %v348 = vperm.slane %v320, 0
    %v350 = vmul.f32 %v345, %v348
    %v351 = vmul.f32 %v346, %v348
    %v352 = vsel %vm327, %v350, 0.0
    %353 = vadd.xlane.f32.xlu0 %v352
    %v354 = vpop.xlane.xlu0 %353
    %v355 = vsel %vm327, %v351, 0.0
    %356 = vadd.xlane.f32.xlu0 %v355
    %v357 = vpop.xlane.xlu0 %356
    %v358 = vsub.f32 %v354, %v357
    %v359 = vxor.u32 %v358, 2147483648
    %v360 = vmul.f32 %v359, 1.442695
    %v361 = vpow.pop %v360
    %v362 = vadd.f32 %v361, 1.0
    %v363 = vrcp.pop %v362
    %v364 = vmul.f32 %v362, %v363
    %v365 = vsub.f32 1.0, %v364
    %v366 = vmul.f32 %v363, %v365
    %v367 = vadd.f32 %v363, %v366
    %vm368 = vweird.f32 %v362
    %vm369 = vweird.f32 %v363
    %vm370 = vmor %vm368, %vm369
    %v371 = vsel %vm370, %v363, %v367
    %v372 = vand.u32 2147483647, %v362
    %vm373 = vcmp.eq.f32.partialorder %v372, 8.507059e+37
    %v374 = vand.u32 %v362, 2147483648
    %v375 = vor.u32 1.1754944e-38, %v374
    %v376 = vsel %vm373, %v375, %v371
    %v377 = vmul.f32 1.0, %v376
    %v378 = vmul.f32 %v377, %v279
    %v379 = vsub.f32 1.0, %v377
    %v380 = vmul.f32 %v379, %v314
    %v381 = vadd.f32 %v378, %v380
    %v382 = vld [vmem:[%s3] sm:$0xff]
    %v383 = vld [vmem:[%s11] sm:$0xff]
    %v384 = vld [vmem:[%s11 + $0x8] sm:$0xff]
    %v385 = vld [vmem:[%s11 + $0x10] sm:$0xff]
    %v386 = vld [vmem:[%s11 + $0x18] sm:$0xff]
    %v387 = vld [vmem:[#allocation12] sm:$0x1]
    %v388 = vld [vmem:[#allocation13] sm:$0x1]
    %v389 = vpack.c.bf16 %v382, %v311
    %v390 = vpack.c.bf16 %v384, %v383
    %v391 = vpack.c.bf16 %v386, %v385
    %v393 = vperm.slane %v387, 0
    %v396 = vsel %vm327, %v389, 0
    %398 = vmatpush.bf16.msra.mxu0 0
    %399 = vmatpush.bf16.msra.mxu0 0
    %400 = vmatpush.bf16.msra.mxu0 0
    %401 = vmatpush.bf16.msra.mxu0 0
    %402 = vmatpush.bf16.msra.mxu0 0
    %403 = vmatpush.bf16.msra.mxu0 0
    %404 = vmatpush.bf16.msra.mxu0 %v391
    %405 = vmatpush.bf16.msra.mxu0 %v390
    %406 = vmatmul.bf16.gmra.mxu0 %v396
    %v407 = vpop.f32.mrf.mxu0
    %v408 = vadd.f32 %v393, %v407
    %v409 = vpop.f32.mrf.mxu0
    %v410 = vadd.f32 %v393, %v409
    %411 = vdwg.mxu0
    %v412 = vtanh.pop %v408
    %v413 = vtanh.pop %v410
    %v415 = vperm.slane %v388, 0
    %v417 = vmul.f32 %v412, %v415
    %v418 = vmul.f32 %v413, %v415
    %v419 = vsel %vm327, %v417, 0.0
    %420 = vadd.xlane.f32.xlu0 %v419
    %v421 = vpop.xlane.xlu0 %420
    %v422 = vsel %vm327, %v418, 0.0
    %423 = vadd.xlane.f32.xlu0 %v422
    %v424 = vpop.xlane.xlu0 %423
    %v425 = vsub.f32 %v421, %v424
    %v426 = vxor.u32 %v425, 2147483648
    %v427 = vmul.f32 %v426, 1.442695
    %v428 = vpow.pop %v427
    %v429 = vadd.f32 %v428, 1.0
    %v430 = vrcp.pop %v429
    %v431 = vmul.f32 %v429, %v430
    %v432 = vsub.f32 1.0, %v431
    %v433 = vmul.f32 %v430, %v432
    %v434 = vadd.f32 %v430, %v433
    %vm435 = vweird.f32 %v429
    %vm436 = vweird.f32 %v430
    %vm437 = vmor %vm435, %vm436
    %v438 = vsel %vm437, %v430, %v434
    %v439 = vand.u32 2147483647, %v429
    %vm440 = vcmp.eq.f32.partialorder %v439, 8.507059e+37
    %v441 = vand.u32 %v429, 2147483648
    %v442 = vor.u32 1.1754944e-38, %v441
    %v443 = vsel %vm440, %v442, %v438
    %v444 = vmul.f32 1.0, %v443
    %v445 = vmul.f32 %v444, %v311
    %v446 = vsub.f32 1.0, %v444
    %v447 = vmul.f32 %v446, %v382
    %v448 = vadd.f32 %v445, %v447
    %v449 = vld [vmem:[%s14] sm:$0xff]
    %v450 = vld [vmem:[%s14 + $0x8] sm:$0xff]
    %v451 = vld [vmem:[%s14 + $0x10] sm:$0xff]
    %v452 = vld [vmem:[%s14 + $0x18] sm:$0xff]
    %v453 = vld [vmem:[#allocation15] sm:$0x1]
    %v454 = vld [vmem:[#allocation16] sm:$0x1]
    %v455 = vpack.c.bf16 %v448, %v381
    %v456 = vpack.c.bf16 %v450, %v449
    %v457 = vpack.c.bf16 %v452, %v451
    %v459 = vperm.slane %v453, 0
    %v462 = vsel %vm327, %v455, 0
    %464 = vmatpush.bf16.msra.mxu0 0
    %465 = vmatpush.bf16.msra.mxu0 0
    %466 = vmatpush.bf16.msra.mxu0 0
    %467 = vmatpush.bf16.msra.mxu0 0
    %468 = vmatpush.bf16.msra.mxu0 0
    %469 = vmatpush.bf16.msra.mxu0 0
    %470 = vmatpush.bf16.msra.mxu0 %v457
    %471 = vmatpush.bf16.msra.mxu0 %v456
    %472 = vmatmul.bf16.gmra.mxu0 %v462
    %v473 = vpop.f32.mrf.mxu0
    %v474 = vadd.f32 %v459, %v473
    %v475 = vpop.f32.mrf.mxu0
    %v476 = vadd.f32 %v459, %v475
    %477 = vdwg.mxu0
    %v478 = vtanh.pop %v474
    %v479 = vtanh.pop %v476
    %v481 = vperm.slane %v454, 0
    %v483 = vmul.f32 %v478, %v481
    %v484 = vmul.f32 %v479, %v481
    %v485 = vsel %vm327, %v483, 0.0
    %486 = vadd.xlane.f32.xlu0 %v485
    %v487 = vpop.xlane.xlu0 %486
    %v488 = vsel %vm327, %v484, 0.0
    %489 = vadd.xlane.f32.xlu0 %v488
    %v490 = vpop.xlane.xlu0 %489
    %v491 = vsub.f32 %v487, %v490
    %v492 = vxor.u32 %v491, 2147483648
    %v493 = vmul.f32 %v492, 1.442695
    %v494 = vpow.pop %v493
    %v495 = vadd.f32 %v494, 1.0
    %v496 = vrcp.pop %v495
    %v497 = vmul.f32 %v495, %v496
    %v498 = vsub.f32 1.0, %v497
    %v499 = vmul.f32 %v496, %v498
    %v500 = vadd.f32 %v496, %v499
    %vm501 = vweird.f32 %v495
    %vm502 = vweird.f32 %v496
    %vm503 = vmor %vm501, %vm502
    %v504 = vsel %vm503, %v496, %v500
    %v505 = vand.u32 2147483647, %v495
    %vm506 = vcmp.eq.f32.partialorder %v505, 8.507059e+37
    %v507 = vand.u32 %v495, 2147483648
    %v508 = vor.u32 1.1754944e-38, %v507
    %v509 = vsel %vm506, %v508, %v504
    %v510 = vmul.f32 1.0, %v509
    %v511 = vmul.f32 %v510, %v381
    %v512 = vsub.f32 1.0, %v510
    %v513 = vmul.f32 %v512, %v448
    %v514 = vadd.f32 %v511, %v513
    %v515 = vld [vmem:[%s17] sm:$0xff]
    %v516 = vld [vmem:[%s17 + $0x8] sm:$0xff]
    %v517 = vld [vmem:[%s17 + $0x10] sm:$0xff]
    %v518 = vld [vmem:[%s17 + $0x18] sm:$0xff]
    %v519 = vld [vmem:[#allocation18] sm:$0x1]
    %v520 = vld [vmem:[#allocation19] sm:$0x1]
    %v521 = vld [vmem:[#allocation21] sm:$0x1]
    %v522 = vpack.c.bf16 %v514, %v514
    %v523 = vpack.c.bf16 %v516, %v515
    %v524 = vpack.c.bf16 %v518, %v517
    %v526 = vperm.slane %v519, 0
    %v529 = vsel %vm327, %v522, 0
    %531 = vmatpush.bf16.msra.mxu0 0
    %532 = vmatpush.bf16.msra.mxu0 0
    %533 = vmatpush.bf16.msra.mxu0 0
    %534 = vmatpush.bf16.msra.mxu0 0
    %535 = vmatpush.bf16.msra.mxu0 0
    %536 = vmatpush.bf16.msra.mxu0 0
    %537 = vmatpush.bf16.msra.mxu0 %v524
    %538 = vmatpush.bf16.msra.mxu0 %v523
    %539 = vmatmul.bf16.gmra.mxu0 %v529
    %v540 = vpop.f32.mrf.mxu0
    %v541 = vadd.f32 %v526, %v540
    %v542 = vpop.f32.mrf.mxu0
    %543 = vdwg.mxu0
    %v544 = vmax.f32 %v541, 0.0
    %v545 = vsel %vm327, %v544, 0.0
    %546 = vadd.xlane.f32.xlu0 %v545
    %v547 = vpop.xlane.xlu0 %546
    %v548 = vrcp.pop 32.0
    %v549 = vmul.f32 32.0, %v548
    %v550 = vsub.f32 1.0, %v549
    %v551 = vmul.f32 %v548, %v550
    %v552 = vadd.f32 %v548, %v551
    %vm553 = vweird.f32 %v548
    %v554 = vsel %vm553, %v548, %v552
    %v555 = vmul.f32 %v547, %v554
    %v556 = vsub.f32 %v544, %v555
    %v557 = vmul.f32 %v556, %v556
    %v558 = vsel %vm327, %v557, 0.0
    %559 = vadd.xlane.f32.xlu0 %v558
    %v560 = vpop.xlane.xlu0 %559
    %v561 = vmul.f32 %v560, %v554
    %v562 = vadd.f32 %v561, 1e-06
    %v563 = vrsqrt.pop %v562
    %v564 = vmul.f32 %v563, %v562
    %v565 = vmul.f32 %v564, %v563
    %v566 = vmul.f32 0.5, %v565
    %v567 = vsub.f32 1.5, %v566
    %v568 = vmul.f32 %v563, %v567
    %vm569 = vweird.f32 %v562
    %vm570 = vweird.f32 %v563
    %vm571 = vmor %vm569, %vm570
    %v572 = vsel %vm571, %v563, %v568
    %v573 = vmul.f32 %v556, %v572
    %v575 = vperm.slane %v520, 0
    %v577 = vmul.f32 %v573, %v575
    %v579 = vperm.slane %v521, 0
    %v581 = vadd.f32 %v577, %v579
    %583 = vrot.lane.b32.xlu0 %v311, 32
    %v584 = vpop.permute.xlu0 %583
    %587 = vrot.lane.b32.xlu0 %v381, 64
    %v588 = vpop.permute.xlu0 %587
    %591 = vrot.lane.b32.xlu0 %v448, 96
    %v592 = vpop.permute.xlu0 %591
    %595 = vrot.lane.b32.xlu0 %v581, 32
    %v596 = vpop.permute.xlu0 %595
    %v598 = vsel %vm327, %v279, %v584
    %v599 = vsel %vm265, %v598, %v588
    %vm600 = vcmask 785408
    %v601 = vsel %vm600, %v599, %v592
    %v602 = vsel %vm327, %v514, %v596
    %603 = vst [vmem:[%s21] sm:$0xff] %v601
    %604 = vst.msk [vmem:[%s21 + $0x8] sm:$0xff] %vm265, %v602
    %v605 = vmul.f32 %v279, %v279
    %v606 = vsel %vm327, %v605, 0.0
    %607 = vadd.xlane.f32.xlu0 %v606
    %v608 = vpop.xlane.xlu0 %607
    %v609 = vmax.f32 %v608, 1e-24
    %v610 = vrsqrt.pop %v609
    %v611 = vmul.f32 %v610, %v609
    %v612 = vmul.f32 %v611, %v610
    %v613 = vmul.f32 0.5, %v612
    %v614 = vsub.f32 1.5, %v613
    %v615 = vmul.f32 %v610, %v614
    %vm616 = vweird.f32 %v609
    %vm617 = vweird.f32 %v610
    %vm618 = vmor %vm616, %vm617
    %v619 = vsel %vm618, %v610, %v615
    %v620 = vmul.f32 %v279, %v619
    %v621 = vmul.f32 %v311, %v311
    %v622 = vsel %vm327, %v621, 0.0
    %623 = vadd.xlane.f32.xlu0 %v622
    %v624 = vpop.xlane.xlu0 %623
    %v625 = vmax.f32 %v624, 1e-24
    %v626 = vrsqrt.pop %v625
    %v627 = vmul.f32 %v626, %v625
    %v628 = vmul.f32 %v627, %v626
    %v629 = vmul.f32 0.5, %v628
    %v630 = vsub.f32 1.5, %v629
    %v631 = vmul.f32 %v626, %v630
    %vm632 = vweird.f32 %v625
    %vm633 = vweird.f32 %v626
    %vm634 = vmor %vm632, %vm633
    %v635 = vsel %vm634, %v626, %v631
    %v636 = vmul.f32 %v311, %v635
    %638 = vrot.lane.b32.xlu0 %v636, 32
    %v639 = vpop.permute.xlu0 %638
    %v641 = vsel %vm327, %v620, %v639
    %v642 = vpack.c.bf16 %v641, %v641
    %vm643 = vcmask 519168
    %644 = vst.msk [vmem:[%s22] sm:$0xf] %vm643, %v642
    // Predicated region
    $region138: #{midgcn_forward.6} parent=1 // pred_check
      _
    $region139: #{midgcn_forward.6} parent=1 // pred_check_branch
      %646 = sbr.rel (0) target = $region141
    $region140: #{midgcn_forward.6} parent=1 // pred_region
      _
    $region141: #{midgcn_forward.6} parent=1 // pred_fallthru
      _
    // Predicated region
    $region142: #{midgcn_forward.6} parent=1 // pred_check
      _
    $region143: #{midgcn_forward.6} parent=1 // pred_check_branch
      %648 = sbr.rel (0) target = $region145
    $region144: #{midgcn_forward.6} parent=1 // pred_region
      _
    $region145: #{midgcn_forward.6} parent=1 // pred_fallthru
      _
    // Predicated region
    $region146: #{midgcn_forward.6} parent=1 // pred_check
      _
    $region147: #{midgcn_forward.6} parent=1 // pred_check_branch
      %650 = sbr.rel (0) target = $region149
    $region148: #{midgcn_forward.6} parent=1 // pred_region
      _
    $region149: #{midgcn_forward.6} parent=1 // pred_fallthru
      _
    // Predicated region
    $region150: #{midgcn_forward.6} parent=1 // pred_check
      _
    $region151: #{midgcn_forward.6} parent=1 // pred_check_branch
      %652 = sbr.rel (0) target = $region153
    $region152: #{midgcn_forward.6} parent=1 // pred_region
      _
    $region153: #{midgcn_forward.6} parent=1 // pred_fallthru
      _
    %653 = vsyncpa [#allocation3], 1
    %654 = vsyncpa [#allocation5], 1
    %655 = vsyncpa [#allocation8], 1
    %656 = vsyncpa [#allocation11], 1
    %657 = vsyncpa [#allocation14], 1
    %658 = vsyncpa [#allocation17], 1
    %659 = vsyncpa [#allocation20], 1

// kernel: midgcn_forward.9
$region0: #{midgcn_forward.9}
  #allocation0 [shape = 'u32[]', space=smem, size = 0x4, offset = 0x4, fixed_abs, tag = 'smem constant byte address 0x4 - core index']
  #allocation1 [shape = 'u32[72,128]{1,0:T(1,128)}', space=vmem, size = 0x9000, scoped, tag = 'internal scratch']
  %s0 = inlined_call_operand.vmem [shape: bf16[16,16], index: 0, kind: input, shape index: {}]
  %s1 = inlined_call_operand.vmem [shape: bf16[16,64], index: 1, kind: input, shape index: {}]
  %s2 = inlined_call_operand.vmem [shape: f32[16,64], index: 2, kind: input, shape index: {}]
  %s3 = inlined_call_operand.vmem [shape: f32[16,64], index: 3, kind: input, shape index: {}, may-alias: {3,5}]
  %s4 = inlined_call_operand.hbm [shape: bf16[16,64], index: 4, kind: output, shape index: {0}]
  %s5 = inlined_call_operand.vmem [shape: f32[16,64], index: 5, kind: output, shape index: {1}, may-alias: {3,5}]
  %6 = xla_tuple %s4, %s5
  %s7 = sld [smem:[#allocation0]]
  $region42: #{midgcn_forward.9} parent=0
    _
  %s9 = ssub.s32 1, %s7
  %s10 = scalar_select 0, %s9, %s7
  $region1: #{midgcn_forward.9} parent=0
    #allocation2 [shape = 'u8[4096]{0}', space=vmem, size = 0x1000, scoped, tag = 'output window, operand 0, single buffered']
    #allocation3 [shape = 's32[1]{0}', space=sflag, size = 0x4, scoped, tag = 'scoped memory for midgcn_forward.9']
    %11 = vsyncpa [#allocation3], 0
    // Predicated region
    $region2: #{midgcn_forward.9} parent=1 // pred_check
      _
    $region3: #{midgcn_forward.9} parent=1 // pred_check_branch
      %13 = sbr.rel (0) target = $region5
    $region4: #{midgcn_forward.9} parent=1 // pred_region
      _
    $region5: #{midgcn_forward.9} parent=1 // pred_fallthru
      _
    // Predicated region
    $region6: #{midgcn_forward.9} parent=1 // pred_check
      _
    $region7: #{midgcn_forward.9} parent=1 // pred_check_branch
      %15 = sbr.rel (0) target = $region9
    $region8: #{midgcn_forward.9} parent=1 // pred_region
      _
    $region9: #{midgcn_forward.9} parent=1 // pred_fallthru
      _
    // Predicated region
    $region10: #{midgcn_forward.9} parent=1 // pred_check
      _
    $region11: #{midgcn_forward.9} parent=1 // pred_check_branch
      %17 = sbr.rel (0) target = $region13
    $region12: #{midgcn_forward.9} parent=1 // pred_region
      _
    $region13: #{midgcn_forward.9} parent=1 // pred_fallthru
      _
    // Predicated region
    $region14: #{midgcn_forward.9} parent=1 // pred_check
      _
    $region15: #{midgcn_forward.9} parent=1 // pred_check_branch
      %19 = sbr.rel (0) target = $region17
    $region16: #{midgcn_forward.9} parent=1 // pred_region
      _
    $region17: #{midgcn_forward.9} parent=1 // pred_fallthru
      _
    %p21 = scmp.eq.s32.totalorder 0, 0
    // Predicated region
    $region18: #{midgcn_forward.9} parent=1 // pred_check
      %p22 = pneg %p21
    $region19: #{midgcn_forward.9} parent=1 // pred_check_branch
      %24 = sbr.rel (%p22) target = $region21
    $region20: #{midgcn_forward.9} parent=1 // pred_region
      %v25 = vld [vmem:[%s3] sm:$0xff]
      %v26 = vld [vmem:[%s3 + $0x8] sm:$0xff]
      %v27 = vld [vmem:[%s2] sm:$0xff]
      %v28 = vld [vmem:[%s2 + $0x8] sm:$0xff]
      %v29 = vmul.f32 %v27, 0.5
      %v30 = vmul.f32 %v28, 0.5
      %v31 = vadd.f32 %v25, %v29
      %v32 = vadd.f32 %v26, %v30
      %vm33 = vcmask 523264
      %34 = vst.msk [vmem:[%s5] sm:$0xff] %vm33, %v31
      %35 = vst.msk [vmem:[%s5 + $0x8] sm:$0xff] %vm33, %v32
    $region21: #{midgcn_forward.9} parent=1 // pred_fallthru
      _
    %s36 = smul.u32 0, 16
    %v37 = vld [vmem:[%s5] sm:$0xff]
    %v38 = vld [vmem:[%s5 + $0x8] sm:$0xff]
    %v39 = vld [vmem:[%s0] sm:$0xf]
    %v40 = vld [vmem:[%s0 + $0x4] sm:$0xf]
    %s41 = sshra.s32 %s36, 3
    %s42 = sand.u32 %s36, 7
    %s43 = smul.addr %s41, 4
    %s44 = scalar_lea.vmem %s1, %s43
    %v45 = vld [vmem:[%s44] sm:$0xf]
    %v46 = vld [vmem:[%s44 + $0x4] sm:$0xf]
    %v49 = vunpack.c.l.b16 %v39
    %v50 = vunpack.c.l.b16 %v40
    %v51 = vpack.c.b16 %v50, %v49
    %v54 = vunpack.c.l.b16 %v45
    %v55 = vunpack.c.l.b16 %v46
    %v56 = vpack.c.b16 %v55, %v54
    %vm58 = vcmask 130048
    %v60 = vsel %vm58, %v51, 0
    %62 = vmatpush.bf16.msra.mxu0 0
    %63 = vmatpush.bf16.msra.mxu0 0
    %64 = vmatpush.bf16.msra.mxu0 0
    %65 = vmatpush.bf16.msra.mxu0 0
    %66 = vmatpush.bf16.msra.mxu0 0
    %67 = vmatpush.bf16.msra.mxu0 0
    %68 = vmatpush.bf16.msra.mxu0 0
    %69 = vmatpush.bf16.msra.mxu0 %v56
    %70 = vmatmul.bf16.gmra.mxu0 %v60
    %v71 = vpop.f32.mrf.mxu0
    %v72 = vadd.f32 0.0, %v71
    %v73 = vpop.f32.mrf.mxu0
    %v74 = vadd.f32 0.0, %v73
    %75 = vdwg.mxu0
    %v76 = vadd.f32 %v37, %v72
    %v77 = vadd.f32 %v38, %v74
    %vm78 = vcmask 523264
    %79 = vst.msk [vmem:[%s5] sm:$0xff] %vm78, %v76
    %80 = vst.msk [vmem:[%s5 + $0x8] sm:$0xff] %vm78, %v77
    // Predicated region
    $region22: #{midgcn_forward.9} parent=1 // pred_check
      %p81 = pneg %p21
    $region23: #{midgcn_forward.9} parent=1 // pred_check_branch
      %83 = sbr.rel (%p81) target = $region25
    $region24: #{midgcn_forward.9} parent=1 // pred_region
      %v84 = vld [vmem:[%s5] sm:$0xff]
      %v85 = vld [vmem:[%s5 + $0x8] sm:$0xff]
      %v86 = vld [vmem:[%s3] sm:$0xff]
      %v87 = vld [vmem:[%s3 + $0x8] sm:$0xff]
      %v88 = vsub.f32 %v84, %v86
      %v89 = vsub.f32 %v85, %v87
      %v90 = vpack.c.bf16 %v88, %v88
      %v91 = vpack.c.bf16 %v89, %v89
      %vm92 = vcmask 519168
      %93 = vst.msk [vmem:[#allocation2] sm:$0xf] %vm92, %v90
      %94 = vst.msk [vmem:[#allocation2 + $0x4] sm:$0xf] %vm92, %v91
    $region25: #{midgcn_forward.9} parent=1 // pred_fallthru
      _
    // Predicated region
    $region26: #{midgcn_forward.9} parent=1 // pred_check
      _
    $region27: #{midgcn_forward.9} parent=1 // pred_check_branch
      %96 = sbr.rel (0) target = $region29
    $region28: #{midgcn_forward.9} parent=1 // pred_region
      %98 = vsyncadd [#allocation3], 0
      %s99 = sshll.u32 [#allocation2], 4
      %s100 = int_to_ptr.vmem [resolvable:$true] %s99
      %s101 = sshll.u32 %s4, 4
      %s102 = int_to_ptr.hbm [resolvable:$true] %s101
      %107 = dma.vmem_to_hbm [thread:$0]  %s100, 128, %s102, [#allocation3], 64, 64, 4
    $region29: #{midgcn_forward.9} parent=1 // pred_fallthru
      _
    // Predicated region
    $region30: #{midgcn_forward.9} parent=1 // pred_check
      _
    $region31: #{midgcn_forward.9} parent=1 // pred_check_branch
      %109 = sbr.rel (0) target = $region33
    $region32: #{midgcn_forward.9} parent=1 // pred_region
      _
    $region33: #{midgcn_forward.9} parent=1 // pred_fallthru
      _
    // Predicated region
    $region34: #{midgcn_forward.9} parent=1 // pred_check
      _
    $region35: #{midgcn_forward.9} parent=1 // pred_check_branch
      %111 = sbr.rel (0) target = $region37
    $region36: #{midgcn_forward.9} parent=1 // pred_region
      %113 = dma.done [#allocation3], 128
    $region37: #{midgcn_forward.9} parent=1 // pred_fallthru
      _
    // Predicated region
    $region38: #{midgcn_forward.9} parent=1 // pred_check
      _
    $region39: #{midgcn_forward.9} parent=1 // pred_check_branch
      %115 = sbr.rel (0) target = $region41
    $region40: #{midgcn_forward.9} parent=1 // pred_region
      _
    $region41: #{midgcn_forward.9} parent=1 // pred_fallthru
      _
    %116 = vsyncpa [#allocation3], 1

// kernel: midgcn_forward.11
$region0: #{midgcn_forward.11}
  #allocation0 [shape = 'u32[]', space=smem, size = 0x4, offset = 0x4, fixed_abs, tag = 'smem constant byte address 0x4 - core index']
  #allocation1 [shape = 'u32[72,128]{1,0:T(1,128)}', space=vmem, size = 0x9000, scoped, tag = 'internal scratch']
  %s0 = inlined_call_operand.vmem [shape: f32[16,64], index: 0, kind: input, shape index: {}]
  %s1 = inlined_call_operand.vmem [shape: f32[8,192], index: 1, kind: input, shape index: {}]
  %s2 = inlined_call_operand.vmem [shape: f32[32,32], index: 2, kind: input, shape index: {}]
  %s3 = inlined_call_operand.vmem [shape: f32[1,32], index: 3, kind: input, shape index: {}]
  %s4 = inlined_call_operand.vmem [shape: f32[1,32], index: 4, kind: input, shape index: {}]
  %s5 = inlined_call_operand.vmem [shape: f32[32,32], index: 5, kind: input, shape index: {}]
  %s6 = inlined_call_operand.hbm [shape: f32[1,32], index: 6, kind: input, shape index: {}]
  %s7 = inlined_call_operand.hbm [shape: f32[1,32], index: 7, kind: input, shape index: {}]
  %s8 = inlined_call_operand.hbm [shape: f32[1,32], index: 8, kind: input, shape index: {}]
  %s9 = inlined_call_operand.hbm [shape: f32[8,32], index: 9, kind: output, shape index: {}]
  %s10 = sld [smem:[#allocation0]]
  $region58: #{midgcn_forward.11} parent=0
    _
  %s12 = ssub.s32 1, %s10
  %s13 = scalar_select 0, %s12, %s10
  $region1: #{midgcn_forward.11} parent=0
    #allocation2 [shape = 'u8[512]{0}', space=vmem, size = 0x400, scoped, tag = 'input window, operand 6, single buffered']
    #allocation3 [shape = 's32[1]{0}', space=sflag, size = 0x4, scoped, tag = 'scoped memory for midgcn_forward.11']
    #allocation4 [shape = 's32[1]{0}', space=sflag, size = 0x4, scoped, tag = 'scoped memory for midgcn_forward.11']
    #allocation5 [shape = 'u8[512]{0}', space=vmem, size = 0x400, scoped, tag = 'input window, operand 7, single buffered']
    #allocation6 [shape = 's32[1]{0}', space=sflag, size = 0x4, scoped, tag = 'scoped memory for midgcn_forward.11']
    #allocation7 [shape = 'u8[512]{0}', space=vmem, size = 0x400, scoped, tag = 'input window, operand 8, single buffered']
    #allocation8 [shape = 'u8[4096]{0}', space=vmem, size = 0x1000, scoped, tag = 'output window, operand 0, single buffered']
    %14 = vsyncpa [#allocation3], 0
    %15 = vsyncpa [#allocation6], 0
    %16 = vsyncpa [#allocation4], 0
    // Predicated region
    $region2: #{midgcn_forward.11} parent=1 // pred_check
      _
    $region3: #{midgcn_forward.11} parent=1 // pred_check_branch
      %18 = sbr.rel (0) target = $region5
    $region4: #{midgcn_forward.11} parent=1 // pred_region
      %s19 = sadd.s32 0, 1
      %p20 = scmp.lt.s32.totalorder %s19, 1
      %s21 = scalar_select %p20, %s19, 1
      %s22 = smul.addr %s21, 8
      %s23 = scalar_lea.vmem %s0, %s22
      %s24 = sadd.s32 0, 1
    $region5: #{midgcn_forward.11} parent=1 // pred_fallthru
      _
    // Predicated region
    $region6: #{midgcn_forward.11} parent=1 // pred_check
      _
    $region7: #{midgcn_forward.11} parent=1 // pred_check_branch
      %26 = sbr.rel (0) target = $region9
    $region8: #{midgcn_forward.11} parent=1 // pred_region
      _
    $region9: #{midgcn_forward.11} parent=1 // pred_fallthru
      _
    // Predicated region
    $region10: #{midgcn_forward.11} parent=1 // pred_check
      _
    $region11: #{midgcn_forward.11} parent=1 // pred_check_branch
      %28 = sbr.rel (0) target = $region13
    $region12: #{midgcn_forward.11} parent=1 // pred_region
      _
    $region13: #{midgcn_forward.11} parent=1 // pred_fallthru
      _
    // Predicated region
    $region14: #{midgcn_forward.11} parent=1 // pred_check
      _
    $region15: #{midgcn_forward.11} parent=1 // pred_check_branch
      %30 = sbr.rel (0) target = $region17
    $region16: #{midgcn_forward.11} parent=1 // pred_region
      _
    $region17: #{midgcn_forward.11} parent=1 // pred_fallthru
      _
    // Predicated region
    $region18: #{midgcn_forward.11} parent=1 // pred_check
      _
    $region19: #{midgcn_forward.11} parent=1 // pred_check_branch
      %32 = sbr.rel (0) target = $region21
    $region20: #{midgcn_forward.11} parent=1 // pred_region
      _
    $region21: #{midgcn_forward.11} parent=1 // pred_fallthru
      _
    // Predicated region
    $region22: #{midgcn_forward.11} parent=1 // pred_check
      _
    $region23: #{midgcn_forward.11} parent=1 // pred_check_branch
      %34 = sbr.rel (0) target = $region25
    $region24: #{midgcn_forward.11} parent=1 // pred_region
      _
    $region25: #{midgcn_forward.11} parent=1 // pred_fallthru
      _
    // Predicated region
    $region26: #{midgcn_forward.11} parent=1 // pred_check
      _
    $region27: #{midgcn_forward.11} parent=1 // pred_check_branch
      %36 = sbr.rel (0) target = $region29
    $region28: #{midgcn_forward.11} parent=1 // pred_region
      %38 = vsyncadd [#allocation3], 0
      %s40 = sshll.u32 %s6, 4
      %s41 = int_to_ptr.hbm [resolvable:$true] %s40
      %s42 = sshll.u32 [#allocation2], 4
      %s43 = int_to_ptr.vmem [resolvable:$true] %s42
      %45 = dma.hbm_to_vmem [thread:$0]  %s41, 16, %s43, [#allocation3]
    $region29: #{midgcn_forward.11} parent=1 // pred_fallthru
      _
    // Predicated region
    $region30: #{midgcn_forward.11} parent=1 // pred_check
      _
    $region31: #{midgcn_forward.11} parent=1 // pred_check_branch
      %47 = sbr.rel (0) target = $region33
    $region32: #{midgcn_forward.11} parent=1 // pred_region
      %49 = vsyncadd [#allocation6], 0
      %s51 = sshll.u32 %s7, 4
      %s52 = int_to_ptr.hbm [resolvable:$true] %s51
      %s53 = sshll.u32 [#allocation5], 4
      %s54 = int_to_ptr.vmem [resolvable:$true] %s53
      %56 = dma.hbm_to_vmem [thread:$0]  %s52, 16, %s54, [#allocation6]
    $region33: #{midgcn_forward.11} parent=1 // pred_fallthru
      _
    // Predicated region
    $region34: #{midgcn_forward.11} parent=1 // pred_check
      _
    $region35: #{midgcn_forward.11} parent=1 // pred_check_branch
      %58 = sbr.rel (0) target = $region37
    $region36: #{midgcn_forward.11} parent=1 // pred_region
      %60 = vsyncadd [#allocation6], 0
      %s62 = sshll.u32 %s8, 4
      %s63 = int_to_ptr.hbm [resolvable:$true] %s62
      %s64 = sshll.u32 [#allocation7], 4
      %s65 = int_to_ptr.vmem [resolvable:$true] %s64
      %67 = dma.hbm_to_vmem [thread:$0]  %s63, 16, %s65, [#allocation6]
    $region37: #{midgcn_forward.11} parent=1 // pred_fallthru
      _
    // Predicated region
    $region38: #{midgcn_forward.11} parent=1 // pred_check
      _
    $region39: #{midgcn_forward.11} parent=1 // pred_check_branch
      %69 = sbr.rel (0) target = $region41
    $region40: #{midgcn_forward.11} parent=1 // pred_region
      %71 = dma.done [#allocation3], 16
    $region41: #{midgcn_forward.11} parent=1 // pred_fallthru
      _
    // Predicated region
    $region42: #{midgcn_forward.11} parent=1 // pred_check
      _
    $region43: #{midgcn_forward.11} parent=1 // pred_check_branch
      %73 = sbr.rel (0) target = $region45
    $region44: #{midgcn_forward.11} parent=1 // pred_region
      %75 = dma.done [#allocation6], 16
    $region45: #{midgcn_forward.11} parent=1 // pred_fallthru
      _
    // Predicated region
    $region46: #{midgcn_forward.11} parent=1 // pred_check
      _
    $region47: #{midgcn_forward.11} parent=1 // pred_check_branch
      %77 = sbr.rel (0) target = $region49
    $region48: #{midgcn_forward.11} parent=1 // pred_region
      %79 = dma.done [#allocation6], 16
    $region49: #{midgcn_forward.11} parent=1 // pred_fallthru
      _
    %s80 = sadd.s32 0, 1
    %p81 = scmp.lt.s32.totalorder %s80, 1
    %s82 = scalar_select %p81, %s80, 1
    %s83 = smul.addr %s82, 8
    %s84 = scalar_lea.vmem %s0, %s83
    %s85 = sadd.s32 0, 1
    %p86 = scmp.lt.s32.totalorder %s85, 1
    %s87 = scalar_select %p86, %s85, 1
    %s88 = smul.addr %s87, 8
    %s89 = scalar_lea.vmem %s0, %s88
    %s90 = sadd.s32 0, 1
    %v92 = vld [vmem:[%s89] sm:$0xff]
    %v93 = vmul.f32 %v92, 0.33333334
    %v94 = vld [vmem:[%s2] sm:$0xff]
    %v95 = vld [vmem:[%s2 + $0x8] sm:$0xff]
    %v96 = vld [vmem:[%s2 + $0x10] sm:$0xff]
    %v97 = vld [vmem:[%s2 + $0x18] sm:$0xff]
    %v98 = vld [vmem:[%s3] sm:$0x1]
    %v99 = vld [vmem:[%s4] sm:$0x1]
    %101 = vrot.lane.b32.xlu0 %v93, 32
    %v102 = vpop.permute.xlu0 %101
    %v104 = vpack.c.bf16 %v102, %v93
    %v105 = vpack.c.bf16 %v95, %v94
    %v106 = vpack.c.bf16 %v97, %v96
    %v108 = vperm.slane %v98, 0
    %111 = vrot.lane.b32.xlu0 %v104, 96
    %v112 = vpop.permute.xlu0 %111
    %vm113 = vcmask 261120
    %v115 = vsel %vm113, %v112, 0
    %117 = vmatpush.bf16.msra.mxu0 0
    %118 = vmatpush.bf16.msra.mxu0 0
    %119 = vmatpush.bf16.msra.mxu0 0
    %120 = vmatpush.bf16.msra.mxu0 0
    %121 = vmatpush.bf16.msra.mxu0 0
    %122 = vmatpush.bf16.msra.mxu0 0
    %123 = vmatpush.bf16.msra.mxu0 %v106
    %124 = vmatpush.bf16.msra.mxu0 %v105
    %125 = vmatmul.bf16.gmra.mxu0 %v115
    %v126 = vpop.f32.mrf.mxu0
    %v127 = vadd.f32 %v108, %v126
    %v128 = vpop.f32.mrf.mxu0
    %v129 = vadd.f32 %v108, %v128
    %130 = vdwg.mxu0
    %v131 = vtanh.pop %v127
    %v132 = vtanh.pop %v129
    %v134 = vperm.slane %v99, 0
    %v136 = vmul.f32 %v131, %v134
    %v137 = vmul.f32 %v132, %v134
    %v138 = vsel %vm113, %v136, 0.0
    %139 = vadd.xlane.f32.xlu0 %v138
    %v140 = vpop.xlane.xlu0 %139
    %v141 = vsel %vm113, %v137, 0.0
    %142 = vadd.xlane.f32.xlu0 %v141
    %v143 = vpop.xlane.xlu0 %142
    %v144 = vsub.f32 %v140, %v143
    %v145 = vxor.u32 %v144, 2147483648
    %v146 = vmul.f32 %v145, 1.442695
    %v147 = vpow.pop %v146
    %v148 = vadd.f32 %v147, 1.0
    %v149 = vrcp.pop %v148
    %v150 = vmul.f32 %v148, %v149
    %v151 = vsub.f32 1.0, %v150
    %v152 = vmul.f32 %v149, %v151
    %v153 = vadd.f32 %v149, %v152
    %vm154 = vweird.f32 %v148
    %vm155 = vweird.f32 %v149
    %vm156 = vmor %vm154, %vm155
    %v157 = vsel %vm156, %v149, %v153
    %v158 = vand.u32 2147483647, %v148
    %vm159 = vcmp.eq.f32.partialorder %v158, 8.507059e+37
    %v160 = vand.u32 %v148, 2147483648
    %v161 = vor.u32 1.1754944e-38, %v160
    %v162 = vsel %vm159, %v161, %v157
    %v163 = vmul.f32 1.0, %v162
    %v164 = vmul.f32 %v163, %v93
    %v165 = vsub.f32 1.0, %v163
    %v166 = vmul.f32 %v165, %v93
    %168 = vrot.lane.b32.xlu0 %v166, 32
    %v169 = vpop.permute.xlu0 %168
    %v171 = vadd.f32 %v164, %v169
    %v172 = vld [vmem:[%s5] sm:$0xff]
    %v173 = vld [vmem:[%s5 + $0x8] sm:$0xff]
    %v174 = vld [vmem:[%s5 + $0x10] sm:$0xff]
    %v175 = vld [vmem:[%s5 + $0x18] sm:$0xff]
    %v176 = vld [vmem:[#allocation2] sm:$0x1]
    %v177 = vld [vmem:[#allocation5] sm:$0x1]
    %v178 = vld [vmem:[#allocation7] sm:$0x1]
    %v179 = vpack.c.bf16 %v171, %v171
    %v180 = vpack.c.bf16 %v173, %v172
    %v181 = vpack.c.bf16 %v175, %v174
    %v183 = vperm.slane %v176, 0
    %186 = vrot.lane.b32.xlu0 %v179, 96
    %v187 = vpop.permute.xlu0 %186
    %v189 = vsel %vm113, %v187, 0
    %191 = vmatpush.bf16.msra.mxu0 0
    %192 = vmatpush.bf16.msra.mxu0 0
    %193 = vmatpush.bf16.msra.mxu0 0
    %194 = vmatpush.bf16.msra.mxu0 0
    %195 = vmatpush.bf16.msra.mxu0 0
    %196 = vmatpush.bf16.msra.mxu0 0
    %197 = vmatpush.bf16.msra.mxu0 %v181
    %198 = vmatpush.bf16.msra.mxu0 %v180
    %199 = vmatmul.bf16.gmra.mxu0 %v189
    %v200 = vpop.f32.mrf.mxu0
    %v201 = vadd.f32 %v183, %v200
    %v202 = vpop.f32.mrf.mxu0
    %203 = vdwg.mxu0
    %v204 = vmax.f32 %v201, 0.0
    %v205 = vsel %vm113, %v204, 0.0
    %206 = vadd.xlane.f32.xlu0 %v205
    %v207 = vpop.xlane.xlu0 %206
    %v208 = vrcp.pop 32.0
    %v209 = vmul.f32 32.0, %v208
    %v210 = vsub.f32 1.0, %v209
    %v211 = vmul.f32 %v208, %v210
    %v212 = vadd.f32 %v208, %v211
    %vm213 = vweird.f32 %v208
    %v214 = vsel %vm213, %v208, %v212
    %v215 = vmul.f32 %v207, %v214
    %v216 = vsub.f32 %v204, %v215
    %v217 = vmul.f32 %v216, %v216
    %v218 = vsel %vm113, %v217, 0.0
    %219 = vadd.xlane.f32.xlu0 %v218
    %v220 = vpop.xlane.xlu0 %219
    %v221 = vmul.f32 %v220, %v214
    %v222 = vadd.f32 %v221, 1e-06
    %v223 = vrsqrt.pop %v222
    %v224 = vmul.f32 %v223, %v222
    %v225 = vmul.f32 %v224, %v223
    %v226 = vmul.f32 0.5, %v225
    %v227 = vsub.f32 1.5, %v226
    %v228 = vmul.f32 %v223, %v227
    %vm229 = vweird.f32 %v222
    %vm230 = vweird.f32 %v223
    %vm231 = vmor %vm229, %vm230
    %v232 = vsel %vm231, %v223, %v228
    %v233 = vmul.f32 %v216, %v232
    %v235 = vperm.slane %v177, 0
    %v237 = vmul.f32 %v233, %v235
    %v239 = vperm.slane %v178, 0
    %v241 = vadd.f32 %v237, %v239
    %v242 = vld [vmem:[%s1 + $0x8] sm:$0xff]
    %244 = vrot.lane.b32.xlu0 %v242, 96
    %v245 = vpop.permute.xlu0 %244
    %v247 = vadd.f32 %v241, %v245
    %248 = vst.msk [vmem:[#allocation8] sm:$0xff] %vm113, %v247
    // Predicated region
    $region50: #{midgcn_forward.11} parent=1 // pred_check
      _
    $region51: #{midgcn_forward.11} parent=1 // pred_check_branch
      %250 = sbr.rel (0) target = $region53
    $region52: #{midgcn_forward.11} parent=1 // pred_region
      %252 = vsyncadd [#allocation4], 0
      %s254 = sshll.u32 [#allocation8], 4
      %s255 = int_to_ptr.vmem [resolvable:$true] %s254
      %s256 = sshll.u32 %s9, 4
      %s257 = int_to_ptr.hbm [resolvable:$true] %s256
      %259 = dma.vmem_to_hbm [thread:$0]  %s255, 128, %s257, [#allocation4]
    $region53: #{midgcn_forward.11} parent=1 // pred_fallthru
      _
    // Predicated region
    $region54: #{midgcn_forward.11} parent=1 // pred_check
      _
    $region55: #{midgcn_forward.11} parent=1 // pred_check_branch
      %261 = sbr.rel (0) target = $region57
    $region56: #{midgcn_forward.11} parent=1 // pred_region
      %263 = dma.done [#allocation4], 128
    $region57: #{midgcn_forward.11} parent=1 // pred_fallthru
      _
    %264 = vsyncpa [#allocation3], 1
    %265 = vsyncpa [#allocation6], 1
    %266 = vsyncpa [#allocation4], 1

// kernel: midgcn_forward.10
$region0: #{midgcn_forward.10}
  #allocation0 [shape = 'u32[]', space=smem, size = 0x4, offset = 0x4, fixed_abs, tag = 'smem constant byte address 0x4 - core index']
  #allocation1 [shape = 'u32[72,128]{1,0:T(1,128)}', space=vmem, size = 0x9000, scoped, tag = 'internal scratch']
  %s0 = inlined_call_operand.vmem [shape: f32[16,64], index: 0, kind: input, shape index: {}]
  %s1 = inlined_call_operand.hbm [shape: f32[32,32], index: 1, kind: input, shape index: {}]
  %s2 = inlined_call_operand.vmem [shape: f32[1,32], index: 2, kind: input, shape index: {}]
  %s3 = inlined_call_operand.hbm [shape: f32[1,32], index: 3, kind: input, shape index: {}]
  %s4 = inlined_call_operand.hbm [shape: f32[8,32], index: 4, kind: output, shape index: {}]
  %s5 = sld [smem:[#allocation0]]
  $region34: #{midgcn_forward.10} parent=0
    _
  %s7 = ssub.s32 1, %s5
  %s8 = scalar_select 0, %s7, %s5
  $region1: #{midgcn_forward.10} parent=0
    #allocation2 [shape = 'u8[16384]{0}', space=vmem, size = 0x4000, scoped, tag = 'input window, operand 1, single buffered']
    #allocation3 [shape = 's32[1]{0}', space=sflag, size = 0x4, scoped, tag = 'scoped memory for midgcn_forward.10']
    #allocation4 [shape = 's32[1]{0}', space=sflag, size = 0x4, scoped, tag = 'scoped memory for midgcn_forward.10']
    #allocation5 [shape = 'u8[512]{0}', space=vmem, size = 0x400, scoped, tag = 'input window, operand 3, single buffered']
    #allocation6 [shape = 's32[1]{0}', space=sflag, size = 0x4, scoped, tag = 'scoped memory for midgcn_forward.10']
    #allocation7 [shape = 'u8[4096]{0}', space=vmem, size = 0x1000, scoped, tag = 'output window, operand 0, single buffered']
    %9 = vsyncpa [#allocation3], 0
    %10 = vsyncpa [#allocation6], 0
    %11 = vsyncpa [#allocation4], 0
    // Predicated region
    $region2: #{midgcn_forward.10} parent=1 // pred_check
      _
    $region3: #{midgcn_forward.10} parent=1 // pred_check_branch
      %13 = sbr.rel (0) target = $region5
    $region4: #{midgcn_forward.10} parent=1 // pred_region
      _
    $region5: #{midgcn_forward.10} parent=1 // pred_fallthru
      _
    // Predicated region
    $region6: #{midgcn_forward.10} parent=1 // pred_check
      _
    $region7: #{midgcn_forward.10} parent=1 // pred_check_branch
      %15 = sbr.rel (0) target = $region9
    $region8: #{midgcn_forward.10} parent=1 // pred_region
      %17 = vsyncadd [#allocation3], 0
      %s18 = sshll.u32 %s1, 4
      %s19 = int_to_ptr.hbm [resolvable:$true] %s18
      %s20 = sshll.u32 [#allocation2], 4
      %s21 = int_to_ptr.vmem [resolvable:$true] %s20
      %26 = dma.hbm_to_vmem [thread:$0]  %s19, 512, %s21, [#allocation3], 128, 128, 8
    $region9: #{midgcn_forward.10} parent=1 // pred_fallthru
      _
    // Predicated region
    $region10: #{midgcn_forward.10} parent=1 // pred_check
      _
    $region11: #{midgcn_forward.10} parent=1 // pred_check_branch
      %28 = sbr.rel (0) target = $region13
    $region12: #{midgcn_forward.10} parent=1 // pred_region
      _
    $region13: #{midgcn_forward.10} parent=1 // pred_fallthru
      _
    // Predicated region
    $region14: #{midgcn_forward.10} parent=1 // pred_check
      _
    $region15: #{midgcn_forward.10} parent=1 // pred_check_branch
      %30 = sbr.rel (0) target = $region17
    $region16: #{midgcn_forward.10} parent=1 // pred_region
      %32 = vsyncadd [#allocation6], 0
      %s34 = sshll.u32 %s3, 4
      %s35 = int_to_ptr.hbm [resolvable:$true] %s34
      %s36 = sshll.u32 [#allocation5], 4
      %s37 = int_to_ptr.vmem [resolvable:$true] %s36
      %39 = dma.hbm_to_vmem [thread:$0]  %s35, 16, %s37, [#allocation6]
    $region17: #{midgcn_forward.10} parent=1 // pred_fallthru
      _
    // Predicated region
    $region18: #{midgcn_forward.10} parent=1 // pred_check
      _
    $region19: #{midgcn_forward.10} parent=1 // pred_check_branch
      %41 = sbr.rel (0) target = $region21
    $region20: #{midgcn_forward.10} parent=1 // pred_region
      %43 = dma.done [#allocation3], 512
    $region21: #{midgcn_forward.10} parent=1 // pred_fallthru
      _
    // Predicated region
    $region22: #{midgcn_forward.10} parent=1 // pred_check
      _
    $region23: #{midgcn_forward.10} parent=1 // pred_check_branch
      %45 = sbr.rel (0) target = $region25
    $region24: #{midgcn_forward.10} parent=1 // pred_region
      %47 = dma.done [#allocation6], 16
    $region25: #{midgcn_forward.10} parent=1 // pred_fallthru
      _
    %v49 = vld [vmem:[%s0] sm:$0xff]
    %v50 = vmul.f32 %v49, 0.33333334
    %v51 = vld [vmem:[#allocation2] sm:$0xff]
    %v52 = vld [vmem:[#allocation2 + $0x8] sm:$0xff]
    %v53 = vld [vmem:[#allocation2 + $0x10] sm:$0xff]
    %v54 = vld [vmem:[#allocation2 + $0x18] sm:$0xff]
    %v55 = vld [vmem:[%s2] sm:$0x1]
    %v56 = vld [vmem:[#allocation5] sm:$0x1]
    %58 = vrot.lane.b32.xlu0 %v50, 32
    %v59 = vpop.permute.xlu0 %58
    %v61 = vpack.c.bf16 %v59, %v50
    %v62 = vpack.c.bf16 %v52, %v51
    %v63 = vpack.c.bf16 %v54, %v53
    %v65 = vperm.slane %v55, 0
    %68 = vrot.lane.b32.xlu0 %v61, 96
    %v69 = vpop.permute.xlu0 %68
    %vm70 = vcmask 261120
    %v72 = vsel %vm70, %v69, 0
    %74 = vmatpush.bf16.msra.mxu0 0
    %75 = vmatpush.bf16.msra.mxu0 0
    %76 = vmatpush.bf16.msra.mxu0 0
    %77 = vmatpush.bf16.msra.mxu0 0
    %78 = vmatpush.bf16.msra.mxu0 0
    %79 = vmatpush.bf16.msra.mxu0 0
    %80 = vmatpush.bf16.msra.mxu0 %v63
    %81 = vmatpush.bf16.msra.mxu0 %v62
    %82 = vmatmul.bf16.gmra.mxu0 %v72
    %v83 = vpop.f32.mrf.mxu0
    %v84 = vadd.f32 %v65, %v83
    %v85 = vpop.f32.mrf.mxu0
    %v86 = vadd.f32 %v65, %v85
    %87 = vdwg.mxu0
    %v88 = vtanh.pop %v84
    %v89 = vtanh.pop %v86
    %v91 = vperm.slane %v56, 0
    %v93 = vmul.f32 %v88, %v91
    %v94 = vmul.f32 %v89, %v91
    %v95 = vsel %vm70, %v93, 0.0
    %96 = vadd.xlane.f32.xlu0 %v95
    %v97 = vpop.xlane.xlu0 %96
    %v98 = vsel %vm70, %v94, 0.0
    %99 = vadd.xlane.f32.xlu0 %v98
    %v100 = vpop.xlane.xlu0 %99
    %v101 = vsub.f32 %v97, %v100
    %v102 = vxor.u32 %v101, 2147483648
    %v103 = vmul.f32 %v102, 1.442695
    %v104 = vpow.pop %v103
    %v105 = vadd.f32 %v104, 1.0
    %v106 = vrcp.pop %v105
    %v107 = vmul.f32 %v105, %v106
    %v108 = vsub.f32 1.0, %v107
    %v109 = vmul.f32 %v106, %v108
    %v110 = vadd.f32 %v106, %v109
    %vm111 = vweird.f32 %v105
    %vm112 = vweird.f32 %v106
    %vm113 = vmor %vm111, %vm112
    %v114 = vsel %vm113, %v106, %v110
    %v115 = vand.u32 2147483647, %v105
    %vm116 = vcmp.eq.f32.partialorder %v115, 8.507059e+37
    %v117 = vand.u32 %v105, 2147483648
    %v118 = vor.u32 1.1754944e-38, %v117
    %v119 = vsel %vm116, %v118, %v114
    %v120 = vmul.f32 1.0, %v119
    %v121 = vmul.f32 %v120, %v50
    %v122 = vsub.f32 1.0, %v120
    %v123 = vmul.f32 %v122, %v50
    %125 = vrot.lane.b32.xlu0 %v123, 32
    %v126 = vpop.permute.xlu0 %125
    %v128 = vadd.f32 %v121, %v126
    %130 = vrot.lane.b32.xlu0 %v128, 96
    %v131 = vpop.permute.xlu0 %130
    %133 = vst.msk [vmem:[#allocation7] sm:$0xff] %vm70, %v131
    // Predicated region
    $region26: #{midgcn_forward.10} parent=1 // pred_check
      _
    $region27: #{midgcn_forward.10} parent=1 // pred_check_branch
      %135 = sbr.rel (0) target = $region29
    $region28: #{midgcn_forward.10} parent=1 // pred_region
      %137 = vsyncadd [#allocation4], 0
      %s139 = sshll.u32 [#allocation7], 4
      %s140 = int_to_ptr.vmem [resolvable:$true] %s139
      %s141 = sshll.u32 %s4, 4
      %s142 = int_to_ptr.hbm [resolvable:$true] %s141
      %144 = dma.vmem_to_hbm [thread:$0]  %s140, 128, %s142, [#allocation4]
    $region29: #{midgcn_forward.10} parent=1 // pred_fallthru
      _
    // Predicated region
    $region30: #{midgcn_forward.10} parent=1 // pred_check
      _
    $region31: #{midgcn_forward.10} parent=1 // pred_check_branch
      %146 = sbr.rel (0) target = $region33
    $region32: #{midgcn_forward.10} parent=1 // pred_region
      %148 = dma.done [#allocation4], 128
    $region33: #{midgcn_forward.10} parent=1 // pred_fallthru
      _
    %149 = vsyncpa [#allocation3], 1
    %150 = vsyncpa [#allocation6], 1
    %151 = vsyncpa [#allocation4], 1

</llo_original>
